<compile_context>
chip_gen: v7x
topology: tpu7x:2x2x1
jax: 0.10.0
libtpu: 0.0.40
codegen_flags: <defaults>
</compile_context>

<pallas_src>
import jax
import jax.numpy as jnp
from jax.experimental import pallas as pl
from jax.experimental.pallas import tpu as pltpu

# ----------------------------- problem sizes -----------------------------
N, C_IN, H, W = 2, 4, 16, 16          # input  (NCHW)
C_OUT, KH, KW = 8, 3, 3               # conv weight (C_OUT, C_IN, KH, KW)
PAD, STRIDE = 1, 1                    # "same" 3x3 conv
T = 8                                 # sim_length (SNN timesteps)
OUTW = 1.0                            # SpikeModule.outw

HW = H * W                            # pixels per image (lane axis), 256
LPAD = PAD * (W + 1)                  # flat zero-pad so every tap is a static in-bounds slice
HWP = HW + 2 * LPAD                   # flat-padded pixel count per image
# NOTE on scaling: per-image state in the unrolled T loop is ~5 live (C_OUT,HW)
# f32 arrays = 5*HW/128 vregs; keep HW per grid step <= ~1024 lanes and budget
# the (T,1,C_OUT,HW) output block against v7x's 64 MiB VMEM if sizes grow.


# ------------------------------ Pallas kernel ------------------------------
def spike_kernel(w_ref, b_ref, thr_ref, xpad_ref, conv_ref):
    """One image: fused 3x3 same-conv (9 shifted matmuls) + T-step spiking loop.

    w_ref    : (KH*KW, C_OUT, C_IN) f32  per-tap conv weights
    b_ref    : (C_OUT, 1)           f32  conv bias
    thr_ref  : (C_OUT, 1)           f32  per-channel firing threshold
    xpad_ref : (1, C_IN, HWP)       f32  image, pixels flattened + flat zero pad
    conv_ref : (T, 1, C_OUT, HW)    f32  converge[t]; converge[T-1] == out
    """
    xpf = xpad_ref[0]                                          # (C_IN, HWP)

    # Column index of each output pixel (lane axis); reproduces the left/right
    # zero padding of the 'same' conv (top/bottom padding is handled by the
    # flat zero pad in the wrapper).
    col = jax.lax.broadcasted_iota(jnp.int32, (1, HW), 1) % W  # (1, HW)

    # conv2d as 9 statically shifted (C_OUT,C_IN) x (C_IN,HW) MXU matmuls,
    # accumulated in f32.  Bias folded into the accumulator init.
    acc = jnp.broadcast_to(b_ref[...], (C_OUT, HW))
    for dh in range(KH):
        for dw in range(KW):
            off = (dh - PAD) * W + (dw - PAD)                  # flat pixel offset of tap
            sl = xpf[:, LPAD + off: LPAD + off + HW]           # (C_IN, HW) static slice
            if dw != PAD:                                      # tap column falls in padding?
                dc = dw - PAD
                valid = jnp.logical_and(col + dc >= 0, col + dc < W)
                sl = jnp.where(valid, sl, 0.0)
            acc = acc + jnp.dot(w_ref[dh * KW + dw], sl,
                                preferred_element_type=jnp.float32)

    x = acc                                                    # conv output (C_OUT, HW)

    # Hoisted out of the unrolled loop (JAX does not CSE broadcast_in_dim).
    thr_b = jnp.broadcast_to(thr_ref[...], x.shape)            # (C_OUT, HW)
    spike_val = OUTW * thr_b                                   # spike magnitude

    mem = jnp.zeros_like(x)                                    # mem_pot_init = 0
    out = jnp.zeros_like(x)
    for t in range(T):                                         # small static T -> unrolled VPU loop
        mem = mem + x
        spike = jnp.where(mem >= thr_b, spike_val, 0.0)
        mem = mem - spike
        out = out + spike
        conv_ref[t, 0] = out                                   # converge[t] = running sum


def spike_model_pallas(w_taps, bias2d, thr2d, x_pad_flat):
    return pl.pallas_call(
        spike_kernel,
        out_shape=jax.ShapeDtypeStruct((T, N, C_OUT, HW), jnp.float32),
        grid_spec=pltpu.PrefetchScalarGridSpec(
            num_scalar_prefetch=0,
            grid=(N,),                                # one image per grid step
            in_specs=[
                pl.BlockSpec((KH * KW, C_OUT, C_IN), lambda n: (0, 0, 0)),
                pl.BlockSpec((C_OUT, 1), lambda n: (0, 0)),
                pl.BlockSpec((C_OUT, 1), lambda n: (0, 0)),
                pl.BlockSpec((1, C_IN, HWP), lambda n: (n, 0, 0)),
            ],
            out_specs=pl.BlockSpec((T, 1, C_OUT, HW), lambda n: (0, n, 0, 0)),
        ),
        compiler_params=pltpu.CompilerParams(
            dimension_semantics=("parallel",)),       # both v7x TCs get an image
    )(w_taps, bias2d, thr2d, x_pad_flat)


# ------------------------------ JAX wrapper (single jit) ------------------------------
@jax.jit
def run_spike_model(x_nchw, weight, bias, threshold):
    """Returns (out, converge) matching SpikeModel.forward in spike mode.

    out:      (N, C_OUT, H, W)     sum of spikes over T steps
    converge: (T, N, C_OUT, H, W)  cumulative output after each timestep
    """
    # Flatten pixels per image and add LPAD zeros on each side of the pixel
    # axis so every 3x3 tap becomes a static in-bounds lane slice in-kernel.
    x_flat = x_nchw.reshape(N, C_IN, HW)
    x_pad = jnp.pad(x_flat, ((0, 0), (0, 0), (LPAD, LPAD)))            # (N, C_IN, HWP)

    # (C_OUT, C_IN, KH, KW) -> (KH*KW, C_OUT, C_IN): one (C_OUT,C_IN) block per tap.
    w_taps = weight.transpose(2, 3, 0, 1).reshape(KH * KW, C_OUT, C_IN)
    bias2d = bias.reshape(C_OUT, 1)
    thr2d = threshold.reshape(C_OUT, 1)

    conv_flat = spike_model_pallas(w_taps, bias2d, thr2d, x_pad)       # (T, N, C_OUT, HW)
    converge = conv_flat.reshape(T, N, C_OUT, H, W)                    # metadata-only reshape
    out = converge[T - 1]                                              # final cumulative sum == out
    return out, converge


# ------------------------------ reference ------------------------------
def reference(x_nchw, weight, bias, threshold):
    xc = jax.lax.conv_general_dilated(
        x_nchw, weight, window_strides=(STRIDE, STRIDE),
        padding=((PAD, PAD), (PAD, PAD)),
        dimension_numbers=("NCHW", "OIHW", "NCHW"))
    xc = xc + bias.reshape(1, C_OUT, 1, 1)
    thr = threshold.reshape(1, C_OUT, 1, 1)
    mem = jnp.zeros_like(xc)
    out = jnp.zeros_like(xc)
    converge = []
    for _ in range(T):
        mem = mem + xc
        spike = jnp.where(mem >= thr, OUTW * thr, 0.0)
        mem = mem - spike
        out = out + spike
        converge.append(out)
    return out, converge


# ------------------------------ main ------------------------------
if __name__ == "__main__":
    key = jax.random.PRNGKey(0)
    kx, kw, kb, kt = jax.random.split(key, 4)

    x = jax.random.normal(kx, (N, C_IN, H, W), dtype=jnp.float32)
    weight = 0.1 * jax.random.normal(kw, (C_OUT, C_IN, KH, KW), dtype=jnp.float32)
    bias = 0.05 * jax.random.normal(kb, (C_OUT,), dtype=jnp.float32)
    # threshold is normally set by ANN->SNN calibration; synthesize a positive one.
    threshold = 0.5 + 0.1 * jax.random.uniform(kt, (C_OUT,), dtype=jnp.float32)

    out, conv_stack = run_spike_model(x, weight, bias, threshold)
    out = jax.block_until_ready(out)
    conv_stack = jax.block_until_ready(conv_stack)
    converge = [conv_stack[t] for t in range(T)]

    out_ref, converge_ref = reference(x, weight, bias, threshold)
    assert jnp.allclose(out, out_ref, atol=1e-4, rtol=1e-4)
    for t in range(T):
        assert jnp.allclose(converge[t], converge_ref[t], atol=1e-4, rtol=1e-4)

    print("KERNEL_OK")
</pallas_src>

<mosaic_0001>
module attributes {stable_mosaic.version = 11 : i64} {
  func.func @spike_kernel(%arg0: i32, %arg1: memref<9x8x4xf32, #tpu.memory_space<vmem>>, %arg2: memref<8x1xf32, #tpu.memory_space<vmem>>, %arg3: memref<8x1xf32, #tpu.memory_space<vmem>>, %arg4: memref<1x4x290xf32, #tpu.memory_space<vmem>>, %arg5: memref<8x1x8x256xf32, #tpu.memory_space<vmem>>) attributes {dimension_semantics = [#tpu.dimension_semantics<parallel>], iteration_bounds = array<i64: 2>, scalar_prefetch = 0 : i64, scratch_operands = 0 : i64, tpu.core_type = #tpu.core_type<tc>, window_params = [{pipeline_mode = #tpu.pipeline_mode<synchronous>, transform_indices = @transform_0, window_bounds = array<i64: 9, 8, 4>}, {pipeline_mode = #tpu.pipeline_mode<synchronous>, transform_indices = @transform_1, window_bounds = array<i64: 8, 1>}, {pipeline_mode = #tpu.pipeline_mode<synchronous>, transform_indices = @transform_2, window_bounds = array<i64: 8, 1>}, {transform_indices = @transform_3, window_bounds = array<i64: 1, 4, 290>}, {transform_indices = @transform_4, window_bounds = array<i64: 8, 1, 8, 256>}]} {
    %c0 = arith.constant 0 : index
    %c0_0 = arith.constant 0 : index
    %c0_1 = arith.constant 0 : index
    %0 = vector.load %arg4[%c0, %c0_0, %c0_1] : memref<1x4x290xf32, #tpu.memory_space<vmem>>, vector<1x4x290xf32>
    %1 = vector.shape_cast %0 : vector<1x4x290xf32> to vector<4x290xf32>
    %2 = tpu.iota {dimensions = array<i32: 1>} : vector<1x256xi32>
    %c16_i32 = arith.constant 16 : i32
    %c0_i32 = arith.constant 0 : i32
    %3 = arith.cmpi eq, %c16_i32, %c0_i32 : i32
    %c1_i32 = arith.constant 1 : i32
    %4 = arith.select %3, %c1_i32, %c16_i32 : i32
    %5 = vector.broadcast %4 : i32 to vector<1x256xi32>
    %6 = arith.remsi %2, %5 : vector<1x256xi32>
    %c0_i32_2 = arith.constant 0 : i32
    %7 = vector.broadcast %c0_i32_2 : i32 to vector<1x256xi32>
    %8 = arith.cmpi ne, %6, %7 : vector<1x256xi32>
    %c0_i32_3 = arith.constant 0 : i32
    %9 = vector.broadcast %c0_i32_3 : i32 to vector<1x256xi32>
    %10 = arith.cmpi slt, %6, %9 : vector<1x256xi32>
    %c0_i32_4 = arith.constant 0 : i32
    %11 = arith.cmpi slt, %4, %c0_i32_4 : i32
    %12 = vector.broadcast %11 : i1 to vector<1x256xi1>
    %13 = vector.broadcast %12 : vector<1x256xi1> to vector<1x256xi1>
    %14 = arith.xori %10, %13 : vector<1x256xi1>
    %15 = arith.andi %14, %8 : vector<1x256xi1>
    %16 = vector.broadcast %4 : i32 to vector<1x256xi32>
    %17 = arith.addi %6, %16 : vector<1x256xi32>
    %18 = arith.select %15, %17, %6 : vector<1x256xi1>, vector<1x256xi32>
    %c0_5 = arith.constant 0 : index
    %c0_6 = arith.constant 0 : index
    %19 = vector.load %arg2[%c0_5, %c0_6] : memref<8x1xf32, #tpu.memory_space<vmem>>, vector<8x1xf32>
    %20 = vector.shape_cast %19 : vector<8x1xf32> to vector<8x1xf32>
    %21 = vector.broadcast %20 : vector<8x1xf32> to vector<8x256xf32>
    %22 = vector.extract_strided_slice %1 {offsets = [0, 0], sizes = [4, 256], strides = [1, 1]} : vector<4x290xf32> to vector<4x256xf32>
    %c-1_i32 = arith.constant -1 : i32
    %23 = vector.broadcast %c-1_i32 : i32 to vector<1x256xi32>
    %24 = arith.addi %18, %23 : vector<1x256xi32>
    %c0_i32_7 = arith.constant 0 : i32
    %25 = vector.broadcast %c0_i32_7 : i32 to vector<1x256xi32>
    %26 = arith.cmpi sge, %24, %25 : vector<1x256xi32>
    %c-1_i32_8 = arith.constant -1 : i32
    %27 = vector.broadcast %c-1_i32_8 : i32 to vector<1x256xi32>
    %28 = arith.addi %18, %27 : vector<1x256xi32>
    %c16_i32_9 = arith.constant 16 : i32
    %29 = vector.broadcast %c16_i32_9 : i32 to vector<1x256xi32>
    %30 = arith.cmpi slt, %28, %29 : vector<1x256xi32>
    %31 = arith.andi %26, %30 : vector<1x256xi1>
    %cst = arith.constant 0.000000e+00 : f32
    %32 = vector.shape_cast %31 : vector<1x256xi1> to vector<1x256xi1>
    %33 = vector.broadcast %32 : vector<1x256xi1> to vector<4x256xi1>
    %34 = vector.broadcast %cst : f32 to vector<4x256xf32>
    %35 = arith.select %33, %22, %34 : vector<4x256xi1>, vector<4x256xf32>
    %c0_10 = arith.constant 0 : index
    %c0_11 = arith.constant 0 : index
    %c0_12 = arith.constant 0 : index
    %36 = vector.load %arg1[%c0_10, %c0_11, %c0_12] : memref<9x8x4xf32, #tpu.memory_space<vmem>>, vector<1x8x4xf32>
    %37 = vector.shape_cast %36 : vector<1x8x4xf32> to vector<8x4xf32>
    %cst_13 = arith.constant dense<0.000000e+00> : vector<8x256xf32>
    %38 = tpu.matmul %37, %35, %cst_13 {dimension_numbers = #tpu.dot_dimension_numbers<[1], [0], [0], [1], [0, 0, 1, 1], [], []>} : vector<8x4xf32>, vector<4x256xf32>, vector<8x256xf32> -> vector<8x256xf32>
    %39 = arith.addf %21, %38 : vector<8x256xf32>
    %40 = vector.extract_strided_slice %1 {offsets = [0, 1], sizes = [4, 256], strides = [1, 1]} : vector<4x290xf32> to vector<4x256xf32>
    %c1 = arith.constant 1 : index
    %c0_14 = arith.constant 0 : index
    %c0_15 = arith.constant 0 : index
    %41 = vector.load %arg1[%c1, %c0_14, %c0_15] : memref<9x8x4xf32, #tpu.memory_space<vmem>>, vector<1x8x4xf32>
    %42 = vector.shape_cast %41 : vector<1x8x4xf32> to vector<8x4xf32>
    %cst_16 = arith.constant dense<0.000000e+00> : vector<8x256xf32>
    %43 = tpu.matmul %42, %40, %cst_16 {dimension_numbers = #tpu.dot_dimension_numbers<[1], [0], [0], [1], [0, 0, 1, 1], [], []>} : vector<8x4xf32>, vector<4x256xf32>, vector<8x256xf32> -> vector<8x256xf32>
    %44 = arith.addf %39, %43 : vector<8x256xf32>
    %45 = vector.extract_strided_slice %1 {offsets = [0, 2], sizes = [4, 256], strides = [1, 1]} : vector<4x290xf32> to vector<4x256xf32>
    %c1_i32_17 = arith.constant 1 : i32
    %46 = vector.broadcast %c1_i32_17 : i32 to vector<1x256xi32>
    %47 = arith.addi %18, %46 : vector<1x256xi32>
    %c0_i32_18 = arith.constant 0 : i32
    %48 = vector.broadcast %c0_i32_18 : i32 to vector<1x256xi32>
    %49 = arith.cmpi sge, %47, %48 : vector<1x256xi32>
    %c1_i32_19 = arith.constant 1 : i32
    %50 = vector.broadcast %c1_i32_19 : i32 to vector<1x256xi32>
    %51 = arith.addi %18, %50 : vector<1x256xi32>
    %c16_i32_20 = arith.constant 16 : i32
    %52 = vector.broadcast %c16_i32_20 : i32 to vector<1x256xi32>
    %53 = arith.cmpi slt, %51, %52 : vector<1x256xi32>
    %54 = arith.andi %49, %53 : vector<1x256xi1>
    %cst_21 = arith.constant 0.000000e+00 : f32
    %55 = vector.shape_cast %54 : vector<1x256xi1> to vector<1x256xi1>
    %56 = vector.broadcast %55 : vector<1x256xi1> to vector<4x256xi1>
    %57 = vector.broadcast %cst_21 : f32 to vector<4x256xf32>
    %58 = arith.select %56, %45, %57 : vector<4x256xi1>, vector<4x256xf32>
    %c2 = arith.constant 2 : index
    %c0_22 = arith.constant 0 : index
    %c0_23 = arith.constant 0 : index
    %59 = vector.load %arg1[%c2, %c0_22, %c0_23] : memref<9x8x4xf32, #tpu.memory_space<vmem>>, vector<1x8x4xf32>
    %60 = vector.shape_cast %59 : vector<1x8x4xf32> to vector<8x4xf32>
    %cst_24 = arith.constant dense<0.000000e+00> : vector<8x256xf32>
    %61 = tpu.matmul %60, %58, %cst_24 {dimension_numbers = #tpu.dot_dimension_numbers<[1], [0], [0], [1], [0, 0, 1, 1], [], []>} : vector<8x4xf32>, vector<4x256xf32>, vector<8x256xf32> -> vector<8x256xf32>
    %62 = arith.addf %44, %61 : vector<8x256xf32>
    %63 = vector.extract_strided_slice %1 {offsets = [0, 16], sizes = [4, 256], strides = [1, 1]} : vector<4x290xf32> to vector<4x256xf32>
    %c-1_i32_25 = arith.constant -1 : i32
    %64 = vector.broadcast %c-1_i32_25 : i32 to vector<1x256xi32>
    %65 = arith.addi %18, %64 : vector<1x256xi32>
    %c0_i32_26 = arith.constant 0 : i32
    %66 = vector.broadcast %c0_i32_26 : i32 to vector<1x256xi32>
    %67 = arith.cmpi sge, %65, %66 : vector<1x256xi32>
    %c-1_i32_27 = arith.constant -1 : i32
    %68 = vector.broadcast %c-1_i32_27 : i32 to vector<1x256xi32>
    %69 = arith.addi %18, %68 : vector<1x256xi32>
    %c16_i32_28 = arith.constant 16 : i32
    %70 = vector.broadcast %c16_i32_28 : i32 to vector<1x256xi32>
    %71 = arith.cmpi slt, %69, %70 : vector<1x256xi32>
    %72 = arith.andi %67, %71 : vector<1x256xi1>
    %cst_29 = arith.constant 0.000000e+00 : f32
    %73 = vector.shape_cast %72 : vector<1x256xi1> to vector<1x256xi1>
    %74 = vector.broadcast %73 : vector<1x256xi1> to vector<4x256xi1>
    %75 = vector.broadcast %cst_29 : f32 to vector<4x256xf32>
    %76 = arith.select %74, %63, %75 : vector<4x256xi1>, vector<4x256xf32>
    %c3 = arith.constant 3 : index
    %c0_30 = arith.constant 0 : index
    %c0_31 = arith.constant 0 : index
    %77 = vector.load %arg1[%c3, %c0_30, %c0_31] : memref<9x8x4xf32, #tpu.memory_space<vmem>>, vector<1x8x4xf32>
    %78 = vector.shape_cast %77 : vector<1x8x4xf32> to vector<8x4xf32>
    %cst_32 = arith.constant dense<0.000000e+00> : vector<8x256xf32>
    %79 = tpu.matmul %78, %76, %cst_32 {dimension_numbers = #tpu.dot_dimension_numbers<[1], [0], [0], [1], [0, 0, 1, 1], [], []>} : vector<8x4xf32>, vector<4x256xf32>, vector<8x256xf32> -> vector<8x256xf32>
    %80 = arith.addf %62, %79 : vector<8x256xf32>
    %81 = vector.extract_strided_slice %1 {offsets = [0, 17], sizes = [4, 256], strides = [1, 1]} : vector<4x290xf32> to vector<4x256xf32>
    %c4 = arith.constant 4 : index
    %c0_33 = arith.constant 0 : index
    %c0_34 = arith.constant 0 : index
    %82 = vector.load %arg1[%c4, %c0_33, %c0_34] : memref<9x8x4xf32, #tpu.memory_space<vmem>>, vector<1x8x4xf32>
    %83 = vector.shape_cast %82 : vector<1x8x4xf32> to vector<8x4xf32>
    %cst_35 = arith.constant dense<0.000000e+00> : vector<8x256xf32>
    %84 = tpu.matmul %83, %81, %cst_35 {dimension_numbers = #tpu.dot_dimension_numbers<[1], [0], [0], [1], [0, 0, 1, 1], [], []>} : vector<8x4xf32>, vector<4x256xf32>, vector<8x256xf32> -> vector<8x256xf32>
    %85 = arith.addf %80, %84 : vector<8x256xf32>
    %86 = vector.extract_strided_slice %1 {offsets = [0, 18], sizes = [4, 256], strides = [1, 1]} : vector<4x290xf32> to vector<4x256xf32>
    %c1_i32_36 = arith.constant 1 : i32
    %87 = vector.broadcast %c1_i32_36 : i32 to vector<1x256xi32>
    %88 = arith.addi %18, %87 : vector<1x256xi32>
    %c0_i32_37 = arith.constant 0 : i32
    %89 = vector.broadcast %c0_i32_37 : i32 to vector<1x256xi32>
    %90 = arith.cmpi sge, %88, %89 : vector<1x256xi32>
    %c1_i32_38 = arith.constant 1 : i32
    %91 = vector.broadcast %c1_i32_38 : i32 to vector<1x256xi32>
    %92 = arith.addi %18, %91 : vector<1x256xi32>
    %c16_i32_39 = arith.constant 16 : i32
    %93 = vector.broadcast %c16_i32_39 : i32 to vector<1x256xi32>
    %94 = arith.cmpi slt, %92, %93 : vector<1x256xi32>
    %95 = arith.andi %90, %94 : vector<1x256xi1>
    %cst_40 = arith.constant 0.000000e+00 : f32
    %96 = vector.shape_cast %95 : vector<1x256xi1> to vector<1x256xi1>
    %97 = vector.broadcast %96 : vector<1x256xi1> to vector<4x256xi1>
    %98 = vector.broadcast %cst_40 : f32 to vector<4x256xf32>
    %99 = arith.select %97, %86, %98 : vector<4x256xi1>, vector<4x256xf32>
    %c5 = arith.constant 5 : index
    %c0_41 = arith.constant 0 : index
    %c0_42 = arith.constant 0 : index
    %100 = vector.load %arg1[%c5, %c0_41, %c0_42] : memref<9x8x4xf32, #tpu.memory_space<vmem>>, vector<1x8x4xf32>
    %101 = vector.shape_cast %100 : vector<1x8x4xf32> to vector<8x4xf32>
    %cst_43 = arith.constant dense<0.000000e+00> : vector<8x256xf32>
    %102 = tpu.matmul %101, %99, %cst_43 {dimension_numbers = #tpu.dot_dimension_numbers<[1], [0], [0], [1], [0, 0, 1, 1], [], []>} : vector<8x4xf32>, vector<4x256xf32>, vector<8x256xf32> -> vector<8x256xf32>
    %103 = arith.addf %85, %102 : vector<8x256xf32>
    %104 = vector.extract_strided_slice %1 {offsets = [0, 32], sizes = [4, 256], strides = [1, 1]} : vector<4x290xf32> to vector<4x256xf32>
    %c-1_i32_44 = arith.constant -1 : i32
    %105 = vector.broadcast %c-1_i32_44 : i32 to vector<1x256xi32>
    %106 = arith.addi %18, %105 : vector<1x256xi32>
    %c0_i32_45 = arith.constant 0 : i32
    %107 = vector.broadcast %c0_i32_45 : i32 to vector<1x256xi32>
    %108 = arith.cmpi sge, %106, %107 : vector<1x256xi32>
    %c-1_i32_46 = arith.constant -1 : i32
    %109 = vector.broadcast %c-1_i32_46 : i32 to vector<1x256xi32>
    %110 = arith.addi %18, %109 : vector<1x256xi32>
    %c16_i32_47 = arith.constant 16 : i32
    %111 = vector.broadcast %c16_i32_47 : i32 to vector<1x256xi32>
    %112 = arith.cmpi slt, %110, %111 : vector<1x256xi32>
    %113 = arith.andi %108, %112 : vector<1x256xi1>
    %cst_48 = arith.constant 0.000000e+00 : f32
    %114 = vector.shape_cast %113 : vector<1x256xi1> to vector<1x256xi1>
    %115 = vector.broadcast %114 : vector<1x256xi1> to vector<4x256xi1>
    %116 = vector.broadcast %cst_48 : f32 to vector<4x256xf32>
    %117 = arith.select %115, %104, %116 : vector<4x256xi1>, vector<4x256xf32>
    %c6 = arith.constant 6 : index
    %c0_49 = arith.constant 0 : index
    %c0_50 = arith.constant 0 : index
    %118 = vector.load %arg1[%c6, %c0_49, %c0_50] : memref<9x8x4xf32, #tpu.memory_space<vmem>>, vector<1x8x4xf32>
    %119 = vector.shape_cast %118 : vector<1x8x4xf32> to vector<8x4xf32>
    %cst_51 = arith.constant dense<0.000000e+00> : vector<8x256xf32>
    %120 = tpu.matmul %119, %117, %cst_51 {dimension_numbers = #tpu.dot_dimension_numbers<[1], [0], [0], [1], [0, 0, 1, 1], [], []>} : vector<8x4xf32>, vector<4x256xf32>, vector<8x256xf32> -> vector<8x256xf32>
    %121 = arith.addf %103, %120 : vector<8x256xf32>
    %122 = vector.extract_strided_slice %1 {offsets = [0, 33], sizes = [4, 256], strides = [1, 1]} : vector<4x290xf32> to vector<4x256xf32>
    %c7 = arith.constant 7 : index
    %c0_52 = arith.constant 0 : index
    %c0_53 = arith.constant 0 : index
    %123 = vector.load %arg1[%c7, %c0_52, %c0_53] : memref<9x8x4xf32, #tpu.memory_space<vmem>>, vector<1x8x4xf32>
    %124 = vector.shape_cast %123 : vector<1x8x4xf32> to vector<8x4xf32>
    %cst_54 = arith.constant dense<0.000000e+00> : vector<8x256xf32>
    %125 = tpu.matmul %124, %122, %cst_54 {dimension_numbers = #tpu.dot_dimension_numbers<[1], [0], [0], [1], [0, 0, 1, 1], [], []>} : vector<8x4xf32>, vector<4x256xf32>, vector<8x256xf32> -> vector<8x256xf32>
    %126 = arith.addf %121, %125 : vector<8x256xf32>
    %127 = vector.extract_strided_slice %1 {offsets = [0, 34], sizes = [4, 256], strides = [1, 1]} : vector<4x290xf32> to vector<4x256xf32>
    %c1_i32_55 = arith.constant 1 : i32
    %128 = vector.broadcast %c1_i32_55 : i32 to vector<1x256xi32>
    %129 = arith.addi %18, %128 : vector<1x256xi32>
    %c0_i32_56 = arith.constant 0 : i32
    %130 = vector.broadcast %c0_i32_56 : i32 to vector<1x256xi32>
    %131 = arith.cmpi sge, %129, %130 : vector<1x256xi32>
    %c1_i32_57 = arith.constant 1 : i32
    %132 = vector.broadcast %c1_i32_57 : i32 to vector<1x256xi32>
    %133 = arith.addi %18, %132 : vector<1x256xi32>
    %c16_i32_58 = arith.constant 16 : i32
    %134 = vector.broadcast %c16_i32_58 : i32 to vector<1x256xi32>
    %135 = arith.cmpi slt, %133, %134 : vector<1x256xi32>
    %136 = arith.andi %131, %135 : vector<1x256xi1>
    %cst_59 = arith.constant 0.000000e+00 : f32
    %137 = vector.shape_cast %136 : vector<1x256xi1> to vector<1x256xi1>
    %138 = vector.broadcast %137 : vector<1x256xi1> to vector<4x256xi1>
    %139 = vector.broadcast %cst_59 : f32 to vector<4x256xf32>
    %140 = arith.select %138, %127, %139 : vector<4x256xi1>, vector<4x256xf32>
    %c8 = arith.constant 8 : index
    %c0_60 = arith.constant 0 : index
    %c0_61 = arith.constant 0 : index
    %141 = vector.load %arg1[%c8, %c0_60, %c0_61] : memref<9x8x4xf32, #tpu.memory_space<vmem>>, vector<1x8x4xf32>
    %142 = vector.shape_cast %141 : vector<1x8x4xf32> to vector<8x4xf32>
    %cst_62 = arith.constant dense<0.000000e+00> : vector<8x256xf32>
    %143 = tpu.matmul %142, %140, %cst_62 {dimension_numbers = #tpu.dot_dimension_numbers<[1], [0], [0], [1], [0, 0, 1, 1], [], []>} : vector<8x4xf32>, vector<4x256xf32>, vector<8x256xf32> -> vector<8x256xf32>
    %144 = arith.addf %126, %143 : vector<8x256xf32>
    %c0_63 = arith.constant 0 : index
    %c0_64 = arith.constant 0 : index
    %145 = vector.load %arg3[%c0_63, %c0_64] : memref<8x1xf32, #tpu.memory_space<vmem>>, vector<8x1xf32>
    %146 = vector.shape_cast %145 : vector<8x1xf32> to vector<8x1xf32>
    %147 = vector.broadcast %146 : vector<8x1xf32> to vector<8x256xf32>
    %cst_65 = arith.constant 1.000000e+00 : f32
    %148 = vector.broadcast %cst_65 : f32 to vector<8x256xf32>
    %149 = arith.mulf %148, %147 : vector<8x256xf32>
    %cst_66 = arith.constant 0.000000e+00 : f32
    %150 = vector.broadcast %cst_66 : f32 to vector<8x256xf32>
    %cst_67 = arith.constant 0.000000e+00 : f32
    %151 = vector.broadcast %cst_67 : f32 to vector<8x256xf32>
    %152 = arith.addf %150, %144 : vector<8x256xf32>
    %153 = arith.cmpf oge, %152, %147 : vector<8x256xf32>
    %cst_68 = arith.constant 0.000000e+00 : f32
    %154 = vector.broadcast %cst_68 : f32 to vector<8x256xf32>
    %155 = arith.select %153, %149, %154 : vector<8x256xi1>, vector<8x256xf32>
    %156 = arith.subf %152, %155 : vector<8x256xf32>
    %157 = arith.addf %151, %155 : vector<8x256xf32>
    %c0_69 = arith.constant 0 : index
    %c0_70 = arith.constant 0 : index
    %c0_71 = arith.constant 0 : index
    %c0_72 = arith.constant 0 : index
    %158 = vector.load %arg5[%c0_69, %c0_70, %c0_71, %c0_72] : memref<8x1x8x256xf32, #tpu.memory_space<vmem>>, vector<1x1x8x256xf32>
    %159 = vector.shape_cast %158 : vector<1x1x8x256xf32> to vector<8x256xf32>
    %160 = vector.shape_cast %157 : vector<8x256xf32> to vector<1x1x8x256xf32>
    tpu.vector_store %arg5[%c0_69, %c0_70, %c0_71, %c0_72], %160 {strides = array<i32>} : memref<8x1x8x256xf32, #tpu.memory_space<vmem>>, vector<1x1x8x256xf32>,
    %161 = arith.addf %156, %144 : vector<8x256xf32>
    %162 = arith.cmpf oge, %161, %147 : vector<8x256xf32>
    %cst_73 = arith.constant 0.000000e+00 : f32
    %163 = vector.broadcast %cst_73 : f32 to vector<8x256xf32>
    %164 = arith.select %162, %149, %163 : vector<8x256xi1>, vector<8x256xf32>
    %165 = arith.subf %161, %164 : vector<8x256xf32>
    %166 = arith.addf %157, %164 : vector<8x256xf32>
    %c1_74 = arith.constant 1 : index
    %c0_75 = arith.constant 0 : index
    %c0_76 = arith.constant 0 : index
    %c0_77 = arith.constant 0 : index
    %167 = vector.load %arg5[%c1_74, %c0_75, %c0_76, %c0_77] : memref<8x1x8x256xf32, #tpu.memory_space<vmem>>, vector<1x1x8x256xf32>
    %168 = vector.shape_cast %167 : vector<1x1x8x256xf32> to vector<8x256xf32>
    %169 = vector.shape_cast %166 : vector<8x256xf32> to vector<1x1x8x256xf32>
    tpu.vector_store %arg5[%c1_74, %c0_75, %c0_76, %c0_77], %169 {strides = array<i32>} : memref<8x1x8x256xf32, #tpu.memory_space<vmem>>, vector<1x1x8x256xf32>,
    %170 = arith.addf %165, %144 : vector<8x256xf32>
    %171 = arith.cmpf oge, %170, %147 : vector<8x256xf32>
    %cst_78 = arith.constant 0.000000e+00 : f32
    %172 = vector.broadcast %cst_78 : f32 to vector<8x256xf32>
    %173 = arith.select %171, %149, %172 : vector<8x256xi1>, vector<8x256xf32>
    %174 = arith.subf %170, %173 : vector<8x256xf32>
    %175 = arith.addf %166, %173 : vector<8x256xf32>
    %c2_79 = arith.constant 2 : index
    %c0_80 = arith.constant 0 : index
    %c0_81 = arith.constant 0 : index
    %c0_82 = arith.constant 0 : index
    %176 = vector.load %arg5[%c2_79, %c0_80, %c0_81, %c0_82] : memref<8x1x8x256xf32, #tpu.memory_space<vmem>>, vector<1x1x8x256xf32>
    %177 = vector.shape_cast %176 : vector<1x1x8x256xf32> to vector<8x256xf32>
    %178 = vector.shape_cast %175 : vector<8x256xf32> to vector<1x1x8x256xf32>
    tpu.vector_store %arg5[%c2_79, %c0_80, %c0_81, %c0_82], %178 {strides = array<i32>} : memref<8x1x8x256xf32, #tpu.memory_space<vmem>>, vector<1x1x8x256xf32>,
    %179 = arith.addf %174, %144 : vector<8x256xf32>
    %180 = arith.cmpf oge, %179, %147 : vector<8x256xf32>
    %cst_83 = arith.constant 0.000000e+00 : f32
    %181 = vector.broadcast %cst_83 : f32 to vector<8x256xf32>
    %182 = arith.select %180, %149, %181 : vector<8x256xi1>, vector<8x256xf32>
    %183 = arith.subf %179, %182 : vector<8x256xf32>
    %184 = arith.addf %175, %182 : vector<8x256xf32>
    %c3_84 = arith.constant 3 : index
    %c0_85 = arith.constant 0 : index
    %c0_86 = arith.constant 0 : index
    %c0_87 = arith.constant 0 : index
    %185 = vector.load %arg5[%c3_84, %c0_85, %c0_86, %c0_87] : memref<8x1x8x256xf32, #tpu.memory_space<vmem>>, vector<1x1x8x256xf32>
    %186 = vector.shape_cast %185 : vector<1x1x8x256xf32> to vector<8x256xf32>
    %187 = vector.shape_cast %184 : vector<8x256xf32> to vector<1x1x8x256xf32>
    tpu.vector_store %arg5[%c3_84, %c0_85, %c0_86, %c0_87], %187 {strides = array<i32>} : memref<8x1x8x256xf32, #tpu.memory_space<vmem>>, vector<1x1x8x256xf32>,
    %188 = arith.addf %183, %144 : vector<8x256xf32>
    %189 = arith.cmpf oge, %188, %147 : vector<8x256xf32>
    %cst_88 = arith.constant 0.000000e+00 : f32
    %190 = vector.broadcast %cst_88 : f32 to vector<8x256xf32>
    %191 = arith.select %189, %149, %190 : vector<8x256xi1>, vector<8x256xf32>
    %192 = arith.subf %188, %191 : vector<8x256xf32>
    %193 = arith.addf %184, %191 : vector<8x256xf32>
    %c4_89 = arith.constant 4 : index
    %c0_90 = arith.constant 0 : index
    %c0_91 = arith.constant 0 : index
    %c0_92 = arith.constant 0 : index
    %194 = vector.load %arg5[%c4_89, %c0_90, %c0_91, %c0_92] : memref<8x1x8x256xf32, #tpu.memory_space<vmem>>, vector<1x1x8x256xf32>
    %195 = vector.shape_cast %194 : vector<1x1x8x256xf32> to vector<8x256xf32>
    %196 = vector.shape_cast %193 : vector<8x256xf32> to vector<1x1x8x256xf32>
    tpu.vector_store %arg5[%c4_89, %c0_90, %c0_91, %c0_92], %196 {strides = array<i32>} : memref<8x1x8x256xf32, #tpu.memory_space<vmem>>, vector<1x1x8x256xf32>,
    %197 = arith.addf %192, %144 : vector<8x256xf32>
    %198 = arith.cmpf oge, %197, %147 : vector<8x256xf32>
    %cst_93 = arith.constant 0.000000e+00 : f32
    %199 = vector.broadcast %cst_93 : f32 to vector<8x256xf32>
    %200 = arith.select %198, %149, %199 : vector<8x256xi1>, vector<8x256xf32>
    %201 = arith.subf %197, %200 : vector<8x256xf32>
    %202 = arith.addf %193, %200 : vector<8x256xf32>
    %c5_94 = arith.constant 5 : index
    %c0_95 = arith.constant 0 : index
    %c0_96 = arith.constant 0 : index
    %c0_97 = arith.constant 0 : index
    %203 = vector.load %arg5[%c5_94, %c0_95, %c0_96, %c0_97] : memref<8x1x8x256xf32, #tpu.memory_space<vmem>>, vector<1x1x8x256xf32>
    %204 = vector.shape_cast %203 : vector<1x1x8x256xf32> to vector<8x256xf32>
    %205 = vector.shape_cast %202 : vector<8x256xf32> to vector<1x1x8x256xf32>
    tpu.vector_store %arg5[%c5_94, %c0_95, %c0_96, %c0_97], %205 {strides = array<i32>} : memref<8x1x8x256xf32, #tpu.memory_space<vmem>>, vector<1x1x8x256xf32>,
    %206 = arith.addf %201, %144 : vector<8x256xf32>
    %207 = arith.cmpf oge, %206, %147 : vector<8x256xf32>
    %cst_98 = arith.constant 0.000000e+00 : f32
    %208 = vector.broadcast %cst_98 : f32 to vector<8x256xf32>
    %209 = arith.select %207, %149, %208 : vector<8x256xi1>, vector<8x256xf32>
    %210 = arith.subf %206, %209 : vector<8x256xf32>
    %211 = arith.addf %202, %209 : vector<8x256xf32>
    %c6_99 = arith.constant 6 : index
    %c0_100 = arith.constant 0 : index
    %c0_101 = arith.constant 0 : index
    %c0_102 = arith.constant 0 : index
    %212 = vector.load %arg5[%c6_99, %c0_100, %c0_101, %c0_102] : memref<8x1x8x256xf32, #tpu.memory_space<vmem>>, vector<1x1x8x256xf32>
    %213 = vector.shape_cast %212 : vector<1x1x8x256xf32> to vector<8x256xf32>
    %214 = vector.shape_cast %211 : vector<8x256xf32> to vector<1x1x8x256xf32>
    tpu.vector_store %arg5[%c6_99, %c0_100, %c0_101, %c0_102], %214 {strides = array<i32>} : memref<8x1x8x256xf32, #tpu.memory_space<vmem>>, vector<1x1x8x256xf32>,
    %215 = arith.addf %210, %144 : vector<8x256xf32>
    %216 = arith.cmpf oge, %215, %147 : vector<8x256xf32>
    %cst_103 = arith.constant 0.000000e+00 : f32
    %217 = vector.broadcast %cst_103 : f32 to vector<8x256xf32>
    %218 = arith.select %216, %149, %217 : vector<8x256xi1>, vector<8x256xf32>
    %219 = arith.addf %211, %218 : vector<8x256xf32>
    %c7_104 = arith.constant 7 : index
    %c0_105 = arith.constant 0 : index
    %c0_106 = arith.constant 0 : index
    %c0_107 = arith.constant 0 : index
    %220 = vector.load %arg5[%c7_104, %c0_105, %c0_106, %c0_107] : memref<8x1x8x256xf32, #tpu.memory_space<vmem>>, vector<1x1x8x256xf32>
    %221 = vector.shape_cast %220 : vector<1x1x8x256xf32> to vector<8x256xf32>
    %222 = vector.shape_cast %219 : vector<8x256xf32> to vector<1x1x8x256xf32>
    tpu.vector_store %arg5[%c7_104, %c0_105, %c0_106, %c0_107], %222 {strides = array<i32>} : memref<8x1x8x256xf32, #tpu.memory_space<vmem>>, vector<1x1x8x256xf32>,
    return
  }
  func.func @transform_0(%arg0: i32) -> (i32, i32, i32) {
    %c0_i32 = arith.constant 0 : i32
    %c0_i32_0 = arith.constant 0 : i32
    %c0_i32_1 = arith.constant 0 : i32
    %c0_i32_2 = arith.constant 0 : i32
    return %c0_i32, %c0_i32_0, %c0_i32_1 : i32, i32, i32
  }
  func.func @transform_1(%arg0: i32) -> (i32, i32) {
    %c0_i32 = arith.constant 0 : i32
    %c0_i32_0 = arith.constant 0 : i32
    %c0_i32_1 = arith.constant 0 : i32
    return %c0_i32, %c0_i32_0 : i32, i32
  }
  func.func @transform_2(%arg0: i32) -> (i32, i32) {
    %c0_i32 = arith.constant 0 : i32
    %c0_i32_0 = arith.constant 0 : i32
    %c0_i32_1 = arith.constant 0 : i32
    return %c0_i32, %c0_i32_0 : i32, i32
  }
  func.func @transform_3(%arg0: i32) -> (i32, i32, i32) {
    %c0_i32 = arith.constant 0 : i32
    %c0_i32_0 = arith.constant 0 : i32
    %c0_i32_1 = arith.constant 0 : i32
    return %arg0, %c0_i32, %c0_i32_0 : i32, i32, i32
  }
  func.func @transform_4(%arg0: i32) -> (i32, i32, i32, i32) {
    %c0_i32 = arith.constant 0 : i32
    %c0_i32_0 = arith.constant 0 : i32
    %c0_i32_1 = arith.constant 0 : i32
    %c0_i32_2 = arith.constant 0 : i32
    return %c0_i32, %arg0, %c0_i32_0, %c0_i32_1 : i32, i32, i32, i32
  }
}

</mosaic_0001>

<llo_original>
// kernel: run_spike_model.1
$region0: #{run_spike_model.1}
  #allocation0 [shape = 'u32[]', space=smem, size = 0x4, offset = 0x4, fixed_abs, tag = 'smem constant byte address 0x4 - core index']
  #allocation1 [shape = 'u32[144,128]{1,0:T(1,128)}', space=vmem, size = 0x12000, scoped, tag = 'internal scratch']
  %s0 = inlined_call_operand.vmem [shape: f32[9,8,4], index: 0, kind: input, shape index: {}]
  %s1 = inlined_call_operand.vmem [shape: f32[8,1], index: 1, kind: input, shape index: {}]
  %s2 = inlined_call_operand.vmem [shape: f32[8,1], index: 2, kind: input, shape index: {}]
  %s3 = inlined_call_operand.vmem [shape: f32[2,4,290], index: 3, kind: input, shape index: {}]
  %s4 = inlined_call_operand.vmem [shape: f32[8,2,8,256], index: 4, kind: output, shape index: {}]
  %s5 = sld [smem:[#allocation0]]
  $region68: #{run_spike_model.1} parent=0
    _
  %s7 = ssub.s32 1, %s5
  %s8 = scalar_select 0, %s7, %s5
  $region1: #{run_spike_model.1} parent=0
    #allocation2 [shape = 'u8[131072]{0}', space=vmem, size = 0x20000, scoped, tag = 'output window, operand 0']
    loop: start=0, step=1, limit=4
    $region2: #{run_spike_model.1} parent=1 // loop_pre_header
      _
    $region3: #{run_spike_model.1} parent=1 // loop_header
      %s10 = sphi 0, %s14
      %p11 = scmp.ge.s32.totalorder %s10, 4
      %s18 = sphi 0, %s18
      %s20 = sphi 0, %s18
      %s21 = sphi 0, %s20
      %s35 = sphi 0, %s21
      %s39 = sphi 0, %s39
      %s41 = sphi 0, %s39
      %s42 = sphi 0, %s41
      %s56 = sphi 0, %s42
      %s60 = sphi 0, %s60
      %s62 = sphi 0, %s60
      %s63 = sphi 0, %s62
      %s77 = sphi 0, %s63
      %s83 = sphi 0, %s85
      %s86 = sphi 0, %s83
      %s87 = sphi 0, %s86
      %s103 = sphi 0, %s87
      %s109 = sphi 0, %s111
      %s112 = sphi 0, %s109
      %s113 = sphi 0, %s112
      %s129 = sphi 0, %s113
    $region4: #{run_spike_model.1} parent=1 // loop_header_branch
      %13 = sbr.rel (%p11) target = $region8
    $region5: #{run_spike_model.1} parent=1 // loop_body
      %s15 = ssub.s32 %s10, 1
      %s16 = ssub.s32 %s10, 2
      %s17 = sadd.s32 %s10, 1
      %s19 = sadd.s32 %s18, 1
      %p22 = scmp.eq.s32.totalorder %s10, 1
      %p23 = scmp.ne.s32.totalorder %s18, %s20
      %p24 = scmp.eq.s32.totalorder %s10, 0
      %p25 = por %p23, %p24
      %p26 = scmp.ne.s32.totalorder %s18, %s20
      %p27 = scmp.eq.s32.totalorder %s15, 1
      %p28 = por %p26, %p27
      %p29 = scmp.ne.s32.totalorder %s20, %s21
      %p30 = scmp.eq.s32.totalorder %s15, 0
      %p31 = por %p29, %p30
      %p32 = scmp.ne.s32.totalorder %s20, %s21
      %p33 = scmp.eq.s32.totalorder %s16, 1
      %p34 = por %p32, %p33
      %p36 = scmp.ne.s32.totalorder %s21, %s35
      %p37 = scmp.eq.s32.totalorder %s16, 0
      %p38 = por %p36, %p37
      %s40 = sadd.s32 %s39, 1
      %p43 = scmp.eq.s32.totalorder %s10, 1
      %p44 = scmp.ne.s32.totalorder %s39, %s41
      %p45 = scmp.eq.s32.totalorder %s10, 0
      %p46 = por %p44, %p45
      %p47 = scmp.ne.s32.totalorder %s39, %s41
      %p48 = scmp.eq.s32.totalorder %s15, 1
      %p49 = por %p47, %p48
      %p50 = scmp.ne.s32.totalorder %s41, %s42
      %p51 = scmp.eq.s32.totalorder %s15, 0
      %p52 = por %p50, %p51
      %p53 = scmp.ne.s32.totalorder %s41, %s42
      %p54 = scmp.eq.s32.totalorder %s16, 1
      %p55 = por %p53, %p54
      %p57 = scmp.ne.s32.totalorder %s42, %s56
      %p58 = scmp.eq.s32.totalorder %s16, 0
      %p59 = por %p57, %p58
      %s61 = sadd.s32 %s60, 1
      %p64 = scmp.eq.s32.totalorder %s10, 1
      %p65 = scmp.ne.s32.totalorder %s60, %s62
      %p66 = scmp.eq.s32.totalorder %s10, 0
      %p67 = por %p65, %p66
      %p68 = scmp.ne.s32.totalorder %s60, %s62
      %p69 = scmp.eq.s32.totalorder %s15, 1
      %p70 = por %p68, %p69
      %p71 = scmp.ne.s32.totalorder %s62, %s63
      %p72 = scmp.eq.s32.totalorder %s15, 0
      %p73 = por %p71, %p72
      %p74 = scmp.ne.s32.totalorder %s62, %s63
      %p75 = scmp.eq.s32.totalorder %s16, 1
      %p76 = por %p74, %p75
      %p78 = scmp.ne.s32.totalorder %s63, %s77
      %p79 = scmp.eq.s32.totalorder %s16, 0
      %p80 = por %p78, %p79
      %s81 = ssub.s32 %s10, %s17
      %p82 = scmp.eq.s32.totalorder %s81, 0
      %s84 = sadd.s32 %s83, 1
      %s85 = scalar_select %p82, %s83, %s84
      %p88 = pneg %p82
      %p89 = scmp.eq.s32.totalorder %s10, 1
      %p90 = por %p88, %p89
      %p91 = scmp.ne.s32.totalorder %s83, %s86
      %p92 = scmp.eq.s32.totalorder %s10, 0
      %p93 = por %p91, %p92
      %p94 = scmp.ne.s32.totalorder %s83, %s86
      %p95 = scmp.eq.s32.totalorder %s15, 1
      %p96 = por %p94, %p95
      %p97 = scmp.ne.s32.totalorder %s86, %s87
      %p98 = scmp.eq.s32.totalorder %s15, 0
      %p99 = por %p97, %p98
      %p100 = scmp.ne.s32.totalorder %s86, %s87
      %p101 = scmp.eq.s32.totalorder %s16, 1
      %p102 = por %p100, %p101
      %p104 = scmp.ne.s32.totalorder %s87, %s103
      %p105 = scmp.eq.s32.totalorder %s16, 0
      %p106 = por %p104, %p105
      %s107 = ssub.s32 %s10, %s17
      %p108 = scmp.eq.s32.totalorder %s107, 0
      %s110 = sadd.s32 %s109, 1
      %s111 = scalar_select %p108, %s109, %s110
      %p114 = pneg %p108
      %p115 = scmp.eq.s32.totalorder %s10, 1
      %p116 = por %p114, %p115
      %p117 = scmp.ne.s32.totalorder %s109, %s112
      %p118 = scmp.eq.s32.totalorder %s10, 0
      %p119 = por %p117, %p118
      %p120 = scmp.ne.s32.totalorder %s109, %s112
      %p121 = scmp.eq.s32.totalorder %s15, 1
      %p122 = por %p120, %p121
      %p123 = scmp.ne.s32.totalorder %s112, %s113
      %p124 = scmp.eq.s32.totalorder %s15, 0
      %p125 = por %p123, %p124
      %p126 = scmp.ne.s32.totalorder %s112, %s113
      %p127 = scmp.eq.s32.totalorder %s16, 1
      %p128 = por %p126, %p127
      %p130 = scmp.ne.s32.totalorder %s113, %s129
      %p131 = scmp.eq.s32.totalorder %s16, 0
      %p132 = por %p130, %p131
      %p133 = scmp.le.s32.totalorder 1, %s10
      %p134 = scmp.lt.s32.totalorder %s10, 3
      %p135 = pnand %p133, %p134
      %p136 = pneg %p135
      // Predicated region
      $region9: #{run_spike_model.1} parent=5 // pred_check
        _
      $region10: #{run_spike_model.1} parent=5 // pred_check_branch
        %138 = sbr.rel (%p135) target = $region12
      $region11: #{run_spike_model.1} parent=5 // pred_region
        %s139 = ssub.s32 %s10, 1
        // Predicated region
        $region13: #{run_spike_model.1} parent=11 // pred_check
          %p140 = pneg %p31
        $region14: #{run_spike_model.1} parent=11 // pred_check_branch
          %142 = sbr.rel (%p140) target = $region16
        $region15: #{run_spike_model.1} parent=11 // pred_region
          _
        $region16: #{run_spike_model.1} parent=11 // pred_fallthru
          _
        // Predicated region
        $region17: #{run_spike_model.1} parent=11 // pred_check
          %p143 = pneg %p52
        $region18: #{run_spike_model.1} parent=11 // pred_check_branch
          %145 = sbr.rel (%p143) target = $region20
        $region19: #{run_spike_model.1} parent=11 // pred_region
          _
        $region20: #{run_spike_model.1} parent=11 // pred_fallthru
          _
        // Predicated region
        $region21: #{run_spike_model.1} parent=11 // pred_check
          %p146 = pneg %p73
        $region22: #{run_spike_model.1} parent=11 // pred_check_branch
          %148 = sbr.rel (%p146) target = $region24
        $region23: #{run_spike_model.1} parent=11 // pred_region
          _
        $region24: #{run_spike_model.1} parent=11 // pred_fallthru
          _
      $region12: #{run_spike_model.1} parent=5 // pred_fallthru
        _
      %p149 = scmp.lt.s32.totalorder %s10, 2
      // Predicated region
      $region25: #{run_spike_model.1} parent=5 // pred_check
        %p150 = pneg %p149
      $region26: #{run_spike_model.1} parent=5 // pred_check_branch
        %152 = sbr.rel (%p150) target = $region28
      $region27: #{run_spike_model.1} parent=5 // pred_region
        // Predicated region
        $region29: #{run_spike_model.1} parent=27 // pred_check
          %p153 = pneg %p93
        $region30: #{run_spike_model.1} parent=27 // pred_check_branch
          %155 = sbr.rel (%p153) target = $region32
        $region31: #{run_spike_model.1} parent=27 // pred_region
          %p156 = scmp.lt.s32.totalorder %s10, 1
          %s157 = scalar_select %p156, %s10, 1
          %s158 = smul.addr %s157, 3
          %s159 = smul.addr %s158, 4
          %s160 = scalar_lea.vmem %s3, %s159
        $region32: #{run_spike_model.1} parent=27 // pred_fallthru
          _
      $region28: #{run_spike_model.1} parent=5 // pred_fallthru
        _
      %p161 = scmp.le.s32.totalorder 1, %s10
      %p162 = scmp.lt.s32.totalorder %s10, 3
      %p163 = pnand %p161, %p162
      %p164 = pneg %p163
      // Predicated region
      $region33: #{run_spike_model.1} parent=5 // pred_check
        _
      $region34: #{run_spike_model.1} parent=5 // pred_check_branch
        %166 = sbr.rel (%p163) target = $region36
      $region35: #{run_spike_model.1} parent=5 // pred_region
        %s167 = ssub.s32 %s10, 1
        %p168 = pneg %p31
        %p169 = pneg %p28
        %p170 = pneg %p52
        %p171 = pneg %p49
        %p172 = pneg %p73
        %p173 = pneg %p70
        %p174 = scmp.lt.s32.totalorder %s15, 1
        %s175 = scalar_select %p174, %s15, 1
        %s176 = smul.addr %s175, 3
        %s177 = smul.addr %s176, 4
        %s178 = scalar_lea.vmem %s3, %s177
        %p179 = pneg %p99
        %p180 = pneg %p96
        %p181 = pneg %p125
        %p182 = pneg %p122
        %s183 = sand.u32 %s112, 1
        %s184 = sand.u32 %s112, 1
        %s185 = smul.addr %s184, 128
        %s186 = scalar_lea.vmem [#allocation2], %s185
        %p187 = scmp.lt.s32.totalorder %s15, 1
        %s188 = scalar_select %p187, %s15, 1
        %s189 = smul.addr %s188, 3
        %s190 = smul.addr %s189, 4
        %s191 = scalar_lea.vmem %s3, %s190
        %v192 = vld [vmem:[%s191] sm:$0xff]
        %v193 = vld [vmem:[%s191 + $0x8] sm:$0xf]
        %v194 = vlaneseq
        %v195 = vand.u32 %v194, 127
        %v196 = vadd.s32 %v195, 128
        %vm197 = vcmp.lt.s32.totalorder %v195, 0
        %v198 = vsub.s32 0, %v195
        %v199 = vsel %vm197, %v198, %v195
        %v200 = vshrl.u32 %v199, 4
        %v201 = vand.u32 %v199, 15
        %v202 = vsub.s32 0, %v201
        %v203 = vsel %vm197, %v202, %v201
        %vm204 = vcmp.lt.s32.totalorder %v196, 0
        %v205 = vsub.s32 0, %v196
        %v206 = vsel %vm204, %v205, %v196
        %v207 = vshrl.u32 %v206, 4
        %v208 = vand.u32 %v206, 15
        %v209 = vsub.s32 0, %v208
        %v210 = vsel %vm204, %v209, %v208
        %vm211 = vcmp.ne.s32.totalorder %v203, 0
        %vm212 = vcmp.ne.s32.totalorder %v210, 0
        %vm213 = vcmp.lt.s32.totalorder %v203, 0
        %vm214 = vcmp.lt.s32.totalorder %v210, 0
        %vm215 = vmand %vm213, %vm211
        %vm216 = vmand %vm214, %vm212
        %v217 = vadd.s32 %v203, 16
        %v218 = vadd.s32 %v210, 16
        %v219 = vsel %vm215, %v217, %v203
        %v220 = vsel %vm216, %v218, %v210
        %v221 = vld [vmem:[%s1] sm:$0xff]
        %223 = vset.pattern.permute.xlu0 0
        %224 = vperm.xlu0 %223, %v221
        %v225 = vpop.permute.xlu0 %224
        %v227 = vadd.s32 %v219, 4294967295
        %v228 = vadd.s32 %v220, 4294967295
        %vm229 = vcmp.ge.s32.totalorder %v227, 0
        %vm230 = vcmp.ge.s32.totalorder %v228, 0
        %vm231 = vcmp.lt.s32.totalorder %v227, 16
        %vm232 = vcmp.lt.s32.totalorder %v228, 16
        %vm233 = vmand %vm229, %vm231
        %vm234 = vmand %vm230, %vm232
        %v235 = vsel %vm233, 1, 0
        %v236 = vsel %vm234, 1, 0
        %vm237 = vcmp.eq.s32.totalorder %v235, 1
        %vm238 = vcmp.eq.s32.totalorder %v236, 1
        %v240 = vcombine.high %v192, %v192
        %v242 = vsel %vm237, %v192, 0.0
        %v243 = vsel %vm238, %v240, 0.0
        %v244 = vld [vmem:[%s0] sm:$0xff]
        %vm245 = vcmask 31744
        %v247 = vsel %vm245, %v244, 0
        %vm249 = vcmask 1043456
        %v251 = vsel %vm249, %v242, 0
        %v254 = vsel %vm249, %v243, 0
        %256 = vmatprep.subr.mxu0 %v254
        %257 = vmatpush1.msra.mxu0 %v251
        %258 = vmatprep.subr.mxu0 0.0
        %259 = vmatpush1.msra.mxu0 0.0
        %260 = vmatprep.subr.mxu0 0.0
        %261 = vmatpush1.msra.mxu0 0.0
        %262 = vmatprep.subr.mxu0 0.0
        %263 = vmatpush1.msra.mxu0 0.0
        %264 = vmatprep.subr.mxu0 0.0
        %265 = vmatpush1.msra.mxu0 0.0
        %266 = vmatprep.subr.mxu0 0.0
        %267 = vmatpush1.msra.mxu0 0.0
        %268 = vmatprep.subr.mxu0 0.0
        %269 = vmatpush1.msra.mxu0 0.0
        %270 = vmatprep.subr.mxu0 0.0
        %271 = vmatpush1.msra.mxu0 0.0
        %272 = vmatprep.subr.mxu0 0.0
        %273 = vmatpush1.msra.mxu0 0.0
        %274 = vmatprep.subr.mxu0 0.0
        %275 = vmatpush1.msra.mxu0 0.0
        %276 = vmatprep.subr.mxu0 0.0
        %277 = vmatpush1.msra.mxu0 0.0
        %278 = vmatprep.subr.mxu0 0.0
        %279 = vmatpush1.msra.mxu0 0.0
        %280 = vmatprep.subr.mxu0 0.0
        %281 = vmatpush1.msra.mxu0 0.0
        %282 = vmatprep.subr.mxu0 0.0
        %283 = vmatpush1.msra.mxu0 0.0
        %284 = vmatprep.subr.mxu0 0.0
        %285 = vmatpush1.msra.mxu0 0.0
        %286 = vmatprep.subr.mxu0 0.0
        %287 = vmatpush1.msra.mxu0 0.0
        %288 = vmatprep.subr.mxu0 0.0
        %289 = vmatpush1.msra.mxu0 0.0
        %290 = vmatprep.subr.mxu0 0.0
        %291 = vmatpush1.msra.mxu0 0.0
        %292 = vmatprep.subr.mxu0 0.0
        %293 = vmatpush1.msra.mxu0 0.0
        %294 = vmatprep.subr.mxu0 0.0
        %295 = vmatpush1.msra.mxu0 0.0
        %296 = vmatprep.subr.mxu0 0.0
        %297 = vmatpush1.msra.mxu0 0.0
        %298 = vmatprep.subr.mxu0 0.0
        %299 = vmatpush1.msra.mxu0 0.0
        %300 = vmatprep.subr.mxu0 0.0
        %301 = vmatpush1.msra.mxu0 0.0
        %302 = vmatprep.subr.mxu0 0.0
        %303 = vmatpush1.msra.mxu0 0.0
        %304 = vmatprep.subr.mxu0 0.0
        %305 = vmatpush1.msra.mxu0 0.0
        %306 = vmatprep.subr.mxu0 0.0
        %307 = vmatpush1.msra.mxu0 0.0
        %308 = vmatprep.subr.mxu0 0.0
        %309 = vmatpush1.msra.mxu0 0.0
        %310 = vmatprep.subr.mxu0 0.0
        %311 = vmatpush1.msra.mxu0 0.0
        %312 = vmatprep.subr.mxu0 0.0
        %313 = vmatpush1.msra.mxu0 0.0
        %314 = vmatprep.subr.mxu0 0.0
        %315 = vmatpush1.msra.mxu0 0.0
        %316 = vmatprep.subr.mxu0 0.0
        %317 = vmatpush1.msra.mxu0 0.0
        %318 = vmatprep.subr.mxu0 0.0
        %319 = vmatpush1.msra.mxu0 0.0
        %320 = vmatprep.mubr.f32.mxu0 0.0
        %321 = vmatmul.mubr.f32.gmra.mrb[0].mxu0 %v247
        %v322 = vpop.f32.mrb[0].mxu0
        %v323 = vadd.f32 0.0, %v322
        %v324 = vpop.f32.mrb[0].mxu0
        %v325 = vadd.f32 0.0, %v324
        %326 = vdwg.mxu0
        %v327 = vadd.f32 %v225, %v323
        %v328 = vadd.f32 %v225, %v325
        %s329 = scalar_lea.vmem %s0, 8
        %v330 = vld [vmem:[%s329] sm:$0xff]
        %332 = vrot.lane.b32.xlu0 %v192, 127
        %v333 = vpop.permute.xlu0 %332
        %334 = vrot.lane.b32.xlu0 %v240, 127
        %v335 = vpop.permute.xlu0 %334
        %336 = vrot.lane.b32.xlu0 %v193, 127
        %v337 = vpop.permute.xlu0 %336
        %vm338 = vcmask 1039360
        %v339 = vsel %vm338, %v333, %v335
        %v340 = vsel %vm338, %v335, %v337
        %v342 = vsel %vm245, %v330, 0
        %v344 = vsel %vm249, %v339, 0
        %v346 = vsel %vm249, %v340, 0
        %348 = vmatprep.subr.mxu0 %v346
        %349 = vmatpush1.msra.mxu0 %v344
        %350 = vmatprep.subr.mxu0 0.0
        %351 = vmatpush1.msra.mxu0 0.0
        %352 = vmatprep.subr.mxu0 0.0
        %353 = vmatpush1.msra.mxu0 0.0
        %354 = vmatprep.subr.mxu0 0.0
        %355 = vmatpush1.msra.mxu0 0.0
        %356 = vmatprep.subr.mxu0 0.0
        %357 = vmatpush1.msra.mxu0 0.0
        %358 = vmatprep.subr.mxu0 0.0
        %359 = vmatpush1.msra.mxu0 0.0
        %360 = vmatprep.subr.mxu0 0.0
        %361 = vmatpush1.msra.mxu0 0.0
        %362 = vmatprep.subr.mxu0 0.0
        %363 = vmatpush1.msra.mxu0 0.0
        %364 = vmatprep.subr.mxu0 0.0
        %365 = vmatpush1.msra.mxu0 0.0
        %366 = vmatprep.subr.mxu0 0.0
        %367 = vmatpush1.msra.mxu0 0.0
        %368 = vmatprep.subr.mxu0 0.0
        %369 = vmatpush1.msra.mxu0 0.0
        %370 = vmatprep.subr.mxu0 0.0
        %371 = vmatpush1.msra.mxu0 0.0
        %372 = vmatprep.subr.mxu0 0.0
        %373 = vmatpush1.msra.mxu0 0.0
        %374 = vmatprep.subr.mxu0 0.0
        %375 = vmatpush1.msra.mxu0 0.0
        %376 = vmatprep.subr.mxu0 0.0
        %377 = vmatpush1.msra.mxu0 0.0
        %378 = vmatprep.subr.mxu0 0.0
        %379 = vmatpush1.msra.mxu0 0.0
        %380 = vmatprep.subr.mxu0 0.0
        %381 = vmatpush1.msra.mxu0 0.0
        %382 = vmatprep.subr.mxu0 0.0
        %383 = vmatpush1.msra.mxu0 0.0
        %384 = vmatprep.subr.mxu0 0.0
        %385 = vmatpush1.msra.mxu0 0.0
        %386 = vmatprep.subr.mxu0 0.0
        %387 = vmatpush1.msra.mxu0 0.0
        %388 = vmatprep.subr.mxu0 0.0
        %389 = vmatpush1.msra.mxu0 0.0
        %390 = vmatprep.subr.mxu0 0.0
        %391 = vmatpush1.msra.mxu0 0.0
        %392 = vmatprep.subr.mxu0 0.0
        %393 = vmatpush1.msra.mxu0 0.0
        %394 = vmatprep.subr.mxu0 0.0
        %395 = vmatpush1.msra.mxu0 0.0
        %396 = vmatprep.subr.mxu0 0.0
        %397 = vmatpush1.msra.mxu0 0.0
        %398 = vmatprep.subr.mxu0 0.0
        %399 = vmatpush1.msra.mxu0 0.0
        %400 = vmatprep.subr.mxu0 0.0
        %401 = vmatpush1.msra.mxu0 0.0
        %402 = vmatprep.subr.mxu0 0.0
        %403 = vmatpush1.msra.mxu0 0.0
        %404 = vmatprep.subr.mxu0 0.0
        %405 = vmatpush1.msra.mxu0 0.0
        %406 = vmatprep.subr.mxu0 0.0
        %407 = vmatpush1.msra.mxu0 0.0
        %408 = vmatprep.subr.mxu0 0.0
        %409 = vmatpush1.msra.mxu0 0.0
        %410 = vmatprep.subr.mxu0 0.0
        %411 = vmatpush1.msra.mxu0 0.0
        %412 = vmatprep.mubr.f32.mxu0 0.0
        %413 = vmatmul.mubr.f32.gmra.mrb[0].mxu0 %v342
        %v414 = vpop.f32.mrb[0].mxu0
        %v415 = vadd.f32 0.0, %v414
        %v416 = vpop.f32.mrb[0].mxu0
        %v417 = vadd.f32 0.0, %v416
        %418 = vdwg.mxu0
        %v419 = vadd.f32 %v327, %v415
        %v420 = vadd.f32 %v328, %v417
        %v421 = vadd.s32 %v219, 1
        %v422 = vadd.s32 %v220, 1
        %vm423 = vcmp.ge.s32.totalorder %v421, 0
        %vm424 = vcmp.ge.s32.totalorder %v422, 0
        %vm425 = vcmp.lt.s32.totalorder %v421, 16
        %vm426 = vcmp.lt.s32.totalorder %v422, 16
        %vm427 = vmand %vm423, %vm425
        %vm428 = vmand %vm424, %vm426
        %v429 = vsel %vm427, 1, 0
        %v430 = vsel %vm428, 1, 0
        %vm431 = vcmp.eq.s32.totalorder %v429, 1
        %vm432 = vcmp.eq.s32.totalorder %v430, 1
        %433 = vrot.lane.b32.xlu0 %v192, 126
        %v434 = vpop.permute.xlu0 %433
        %435 = vrot.lane.b32.xlu0 %v240, 126
        %v436 = vpop.permute.xlu0 %435
        %437 = vrot.lane.b32.xlu0 %v193, 126
        %v438 = vpop.permute.xlu0 %437
        %vm439 = vcmask 1031168
        %v440 = vsel %vm439, %v434, %v436
        %v441 = vsel %vm439, %v436, %v438
        %v444 = vsel %vm431, %v440, 0.0
        %v445 = vsel %vm432, %v441, 0.0
        %s446 = scalar_lea.vmem %s0, 16
        %v447 = vld [vmem:[%s446] sm:$0xff]
        %v449 = vsel %vm245, %v447, 0
        %v452 = vsel %vm249, %v444, 0
        %v455 = vsel %vm249, %v445, 0
        %457 = vmatprep.subr.mxu0 %v455
        %458 = vmatpush1.msra.mxu0 %v452
        %459 = vmatprep.subr.mxu0 0.0
        %460 = vmatpush1.msra.mxu0 0.0
        %461 = vmatprep.subr.mxu0 0.0
        %462 = vmatpush1.msra.mxu0 0.0
        %463 = vmatprep.subr.mxu0 0.0
        %464 = vmatpush1.msra.mxu0 0.0
        %465 = vmatprep.subr.mxu0 0.0
        %466 = vmatpush1.msra.mxu0 0.0
        %467 = vmatprep.subr.mxu0 0.0
        %468 = vmatpush1.msra.mxu0 0.0
        %469 = vmatprep.subr.mxu0 0.0
        %470 = vmatpush1.msra.mxu0 0.0
        %471 = vmatprep.subr.mxu0 0.0
        %472 = vmatpush1.msra.mxu0 0.0
        %473 = vmatprep.subr.mxu0 0.0
        %474 = vmatpush1.msra.mxu0 0.0
        %475 = vmatprep.subr.mxu0 0.0
        %476 = vmatpush1.msra.mxu0 0.0
        %477 = vmatprep.subr.mxu0 0.0
        %478 = vmatpush1.msra.mxu0 0.0
        %479 = vmatprep.subr.mxu0 0.0
        %480 = vmatpush1.msra.mxu0 0.0
        %481 = vmatprep.subr.mxu0 0.0
        %482 = vmatpush1.msra.mxu0 0.0
        %483 = vmatprep.subr.mxu0 0.0
        %484 = vmatpush1.msra.mxu0 0.0
        %485 = vmatprep.subr.mxu0 0.0
        %486 = vmatpush1.msra.mxu0 0.0
        %487 = vmatprep.subr.mxu0 0.0
        %488 = vmatpush1.msra.mxu0 0.0
        %489 = vmatprep.subr.mxu0 0.0
        %490 = vmatpush1.msra.mxu0 0.0
        %491 = vmatprep.subr.mxu0 0.0
        %492 = vmatpush1.msra.mxu0 0.0
        %493 = vmatprep.subr.mxu0 0.0
        %494 = vmatpush1.msra.mxu0 0.0
        %495 = vmatprep.subr.mxu0 0.0
        %496 = vmatpush1.msra.mxu0 0.0
        %497 = vmatprep.subr.mxu0 0.0
        %498 = vmatpush1.msra.mxu0 0.0
        %499 = vmatprep.subr.mxu0 0.0
        %500 = vmatpush1.msra.mxu0 0.0
        %501 = vmatprep.subr.mxu0 0.0
        %502 = vmatpush1.msra.mxu0 0.0
        %503 = vmatprep.subr.mxu0 0.0
        %504 = vmatpush1.msra.mxu0 0.0
        %505 = vmatprep.subr.mxu0 0.0
        %506 = vmatpush1.msra.mxu0 0.0
        %507 = vmatprep.subr.mxu0 0.0
        %508 = vmatpush1.msra.mxu0 0.0
        %509 = vmatprep.subr.mxu0 0.0
        %510 = vmatpush1.msra.mxu0 0.0
        %511 = vmatprep.subr.mxu0 0.0
        %512 = vmatpush1.msra.mxu0 0.0
        %513 = vmatprep.subr.mxu0 0.0
        %514 = vmatpush1.msra.mxu0 0.0
        %515 = vmatprep.subr.mxu0 0.0
        %516 = vmatpush1.msra.mxu0 0.0
        %517 = vmatprep.subr.mxu0 0.0
        %518 = vmatpush1.msra.mxu0 0.0
        %519 = vmatprep.subr.mxu0 0.0
        %520 = vmatpush1.msra.mxu0 0.0
        %521 = vmatprep.mubr.f32.mxu0 0.0
        %522 = vmatmul.mubr.f32.gmra.mrb[0].mxu0 %v449
        %v523 = vpop.f32.mrb[0].mxu0
        %v524 = vadd.f32 0.0, %v523
        %v525 = vpop.f32.mrb[0].mxu0
        %v526 = vadd.f32 0.0, %v525
        %527 = vdwg.mxu0
        %v528 = vadd.f32 %v419, %v524
        %v529 = vadd.f32 %v420, %v526
        %530 = vrot.lane.b32.xlu0 %v192, 112
        %v531 = vpop.permute.xlu0 %530
        %532 = vrot.lane.b32.xlu0 %v240, 112
        %v533 = vpop.permute.xlu0 %532
        %534 = vrot.lane.b32.xlu0 %v193, 112
        %v535 = vpop.permute.xlu0 %534
        %vm536 = vcmask 916480
        %v537 = vsel %vm536, %v531, %v533
        %v538 = vsel %vm536, %v533, %v535
        %v541 = vsel %vm237, %v537, 0.0
        %v542 = vsel %vm238, %v538, 0.0
        %s543 = scalar_lea.vmem %s0, 24
        %v544 = vld [vmem:[%s543] sm:$0xff]
        %v546 = vsel %vm245, %v544, 0
        %v549 = vsel %vm249, %v541, 0
        %v552 = vsel %vm249, %v542, 0
        %554 = vmatprep.subr.mxu0 %v552
        %555 = vmatpush1.msra.mxu0 %v549
        %556 = vmatprep.subr.mxu0 0.0
        %557 = vmatpush1.msra.mxu0 0.0
        %558 = vmatprep.subr.mxu0 0.0
        %559 = vmatpush1.msra.mxu0 0.0
        %560 = vmatprep.subr.mxu0 0.0
        %561 = vmatpush1.msra.mxu0 0.0
        %562 = vmatprep.subr.mxu0 0.0
        %563 = vmatpush1.msra.mxu0 0.0
        %564 = vmatprep.subr.mxu0 0.0
        %565 = vmatpush1.msra.mxu0 0.0
        %566 = vmatprep.subr.mxu0 0.0
        %567 = vmatpush1.msra.mxu0 0.0
        %568 = vmatprep.subr.mxu0 0.0
        %569 = vmatpush1.msra.mxu0 0.0
        %570 = vmatprep.subr.mxu0 0.0
        %571 = vmatpush1.msra.mxu0 0.0
        %572 = vmatprep.subr.mxu0 0.0
        %573 = vmatpush1.msra.mxu0 0.0
        %574 = vmatprep.subr.mxu0 0.0
        %575 = vmatpush1.msra.mxu0 0.0
        %576 = vmatprep.subr.mxu0 0.0
        %577 = vmatpush1.msra.mxu0 0.0
        %578 = vmatprep.subr.mxu0 0.0
        %579 = vmatpush1.msra.mxu0 0.0
        %580 = vmatprep.subr.mxu0 0.0
        %581 = vmatpush1.msra.mxu0 0.0
        %582 = vmatprep.subr.mxu0 0.0
        %583 = vmatpush1.msra.mxu0 0.0
        %584 = vmatprep.subr.mxu0 0.0
        %585 = vmatpush1.msra.mxu0 0.0
        %586 = vmatprep.subr.mxu0 0.0
        %587 = vmatpush1.msra.mxu0 0.0
        %588 = vmatprep.subr.mxu0 0.0
        %589 = vmatpush1.msra.mxu0 0.0
        %590 = vmatprep.subr.mxu0 0.0
        %591 = vmatpush1.msra.mxu0 0.0
        %592 = vmatprep.subr.mxu0 0.0
        %593 = vmatpush1.msra.mxu0 0.0
        %594 = vmatprep.subr.mxu0 0.0
        %595 = vmatpush1.msra.mxu0 0.0
        %596 = vmatprep.subr.mxu0 0.0
        %597 = vmatpush1.msra.mxu0 0.0
        %598 = vmatprep.subr.mxu0 0.0
        %599 = vmatpush1.msra.mxu0 0.0
        %600 = vmatprep.subr.mxu0 0.0
        %601 = vmatpush1.msra.mxu0 0.0
        %602 = vmatprep.subr.mxu0 0.0
        %603 = vmatpush1.msra.mxu0 0.0
        %604 = vmatprep.subr.mxu0 0.0
        %605 = vmatpush1.msra.mxu0 0.0
        %606 = vmatprep.subr.mxu0 0.0
        %607 = vmatpush1.msra.mxu0 0.0
        %608 = vmatprep.subr.mxu0 0.0
        %609 = vmatpush1.msra.mxu0 0.0
        %610 = vmatprep.subr.mxu0 0.0
        %611 = vmatpush1.msra.mxu0 0.0
        %612 = vmatprep.subr.mxu0 0.0
        %613 = vmatpush1.msra.mxu0 0.0
        %614 = vmatprep.subr.mxu0 0.0
        %615 = vmatpush1.msra.mxu0 0.0
        %616 = vmatprep.subr.mxu0 0.0
        %617 = vmatpush1.msra.mxu0 0.0
        %618 = vmatprep.mubr.f32.mxu0 0.0
        %619 = vmatmul.mubr.f32.gmra.mrb[0].mxu0 %v546
        %v620 = vpop.f32.mrb[0].mxu0
        %v621 = vadd.f32 0.0, %v620
        %v622 = vpop.f32.mrb[0].mxu0
        %v623 = vadd.f32 0.0, %v622
        %624 = vdwg.mxu0
        %v625 = vadd.f32 %v528, %v621
        %v626 = vadd.f32 %v529, %v623
        %s627 = scalar_lea.vmem %s0, 32
        %v628 = vld [vmem:[%s627] sm:$0xff]
        %629 = vrot.lane.b32.xlu0 %v192, 111
        %v630 = vpop.permute.xlu0 %629
        %631 = vrot.lane.b32.xlu0 %v240, 111
        %v632 = vpop.permute.xlu0 %631
        %633 = vrot.lane.b32.xlu0 %v193, 111
        %v634 = vpop.permute.xlu0 %633
        %vm635 = vcmask 908288
        %v636 = vsel %vm635, %v630, %v632
        %v637 = vsel %vm635, %v632, %v634
        %v639 = vsel %vm245, %v628, 0
        %v641 = vsel %vm249, %v636, 0
        %v643 = vsel %vm249, %v637, 0
        %645 = vmatprep.subr.mxu0 %v643
        %646 = vmatpush1.msra.mxu0 %v641
        %647 = vmatprep.subr.mxu0 0.0
        %648 = vmatpush1.msra.mxu0 0.0
        %649 = vmatprep.subr.mxu0 0.0
        %650 = vmatpush1.msra.mxu0 0.0
        %651 = vmatprep.subr.mxu0 0.0
        %652 = vmatpush1.msra.mxu0 0.0
        %653 = vmatprep.subr.mxu0 0.0
        %654 = vmatpush1.msra.mxu0 0.0
        %655 = vmatprep.subr.mxu0 0.0
        %656 = vmatpush1.msra.mxu0 0.0
        %657 = vmatprep.subr.mxu0 0.0
        %658 = vmatpush1.msra.mxu0 0.0
        %659 = vmatprep.subr.mxu0 0.0
        %660 = vmatpush1.msra.mxu0 0.0
        %661 = vmatprep.subr.mxu0 0.0
        %662 = vmatpush1.msra.mxu0 0.0
        %663 = vmatprep.subr.mxu0 0.0
        %664 = vmatpush1.msra.mxu0 0.0
        %665 = vmatprep.subr.mxu0 0.0
        %666 = vmatpush1.msra.mxu0 0.0
        %667 = vmatprep.subr.mxu0 0.0
        %668 = vmatpush1.msra.mxu0 0.0
        %669 = vmatprep.subr.mxu0 0.0
        %670 = vmatpush1.msra.mxu0 0.0
        %671 = vmatprep.subr.mxu0 0.0
        %672 = vmatpush1.msra.mxu0 0.0
        %673 = vmatprep.subr.mxu0 0.0
        %674 = vmatpush1.msra.mxu0 0.0
        %675 = vmatprep.subr.mxu0 0.0
        %676 = vmatpush1.msra.mxu0 0.0
        %677 = vmatprep.subr.mxu0 0.0
        %678 = vmatpush1.msra.mxu0 0.0
        %679 = vmatprep.subr.mxu0 0.0
        %680 = vmatpush1.msra.mxu0 0.0
        %681 = vmatprep.subr.mxu0 0.0
        %682 = vmatpush1.msra.mxu0 0.0
        %683 = vmatprep.subr.mxu0 0.0
        %684 = vmatpush1.msra.mxu0 0.0
        %685 = vmatprep.subr.mxu0 0.0
        %686 = vmatpush1.msra.mxu0 0.0
        %687 = vmatprep.subr.mxu0 0.0
        %688 = vmatpush1.msra.mxu0 0.0
        %689 = vmatprep.subr.mxu0 0.0
        %690 = vmatpush1.msra.mxu0 0.0
        %691 = vmatprep.subr.mxu0 0.0
        %692 = vmatpush1.msra.mxu0 0.0
        %693 = vmatprep.subr.mxu0 0.0
        %694 = vmatpush1.msra.mxu0 0.0
        %695 = vmatprep.subr.mxu0 0.0
        %696 = vmatpush1.msra.mxu0 0.0
        %697 = vmatprep.subr.mxu0 0.0
        %698 = vmatpush1.msra.mxu0 0.0
        %699 = vmatprep.subr.mxu0 0.0
        %700 = vmatpush1.msra.mxu0 0.0
        %701 = vmatprep.subr.mxu0 0.0
        %702 = vmatpush1.msra.mxu0 0.0
        %703 = vmatprep.subr.mxu0 0.0
        %704 = vmatpush1.msra.mxu0 0.0
        %705 = vmatprep.subr.mxu0 0.0
        %706 = vmatpush1.msra.mxu0 0.0
        %707 = vmatprep.subr.mxu0 0.0
        %708 = vmatpush1.msra.mxu0 0.0
        %709 = vmatprep.mubr.f32.mxu0 0.0
        %710 = vmatmul.mubr.f32.gmra.mrb[0].mxu0 %v639
        %v711 = vpop.f32.mrb[0].mxu0
        %v712 = vadd.f32 0.0, %v711
        %v713 = vpop.f32.mrb[0].mxu0
        %v714 = vadd.f32 0.0, %v713
        %715 = vdwg.mxu0
        %v716 = vadd.f32 %v625, %v712
        %v717 = vadd.f32 %v626, %v714
        %718 = vrot.lane.b32.xlu0 %v192, 110
        %v719 = vpop.permute.xlu0 %718
        %720 = vrot.lane.b32.xlu0 %v240, 110
        %v721 = vpop.permute.xlu0 %720
        %722 = vrot.lane.b32.xlu0 %v193, 110
        %v723 = vpop.permute.xlu0 %722
        %vm724 = vcmask 900096
        %v725 = vsel %vm724, %v719, %v721
        %v726 = vsel %vm724, %v721, %v723
        %v729 = vsel %vm431, %v725, 0.0
        %v730 = vsel %vm432, %v726, 0.0
        %s731 = scalar_lea.vmem %s0, 40
        %v732 = vld [vmem:[%s731] sm:$0xff]
        %v734 = vsel %vm245, %v732, 0
        %v737 = vsel %vm249, %v729, 0
        %v740 = vsel %vm249, %v730, 0
        %742 = vmatprep.subr.mxu0 %v740
        %743 = vmatpush1.msra.mxu0 %v737
        %744 = vmatprep.subr.mxu0 0.0
        %745 = vmatpush1.msra.mxu0 0.0
        %746 = vmatprep.subr.mxu0 0.0
        %747 = vmatpush1.msra.mxu0 0.0
        %748 = vmatprep.subr.mxu0 0.0
        %749 = vmatpush1.msra.mxu0 0.0
        %750 = vmatprep.subr.mxu0 0.0
        %751 = vmatpush1.msra.mxu0 0.0
        %752 = vmatprep.subr.mxu0 0.0
        %753 = vmatpush1.msra.mxu0 0.0
        %754 = vmatprep.subr.mxu0 0.0
        %755 = vmatpush1.msra.mxu0 0.0
        %756 = vmatprep.subr.mxu0 0.0
        %757 = vmatpush1.msra.mxu0 0.0
        %758 = vmatprep.subr.mxu0 0.0
        %759 = vmatpush1.msra.mxu0 0.0
        %760 = vmatprep.subr.mxu0 0.0
        %761 = vmatpush1.msra.mxu0 0.0
        %762 = vmatprep.subr.mxu0 0.0
        %763 = vmatpush1.msra.mxu0 0.0
        %764 = vmatprep.subr.mxu0 0.0
        %765 = vmatpush1.msra.mxu0 0.0
        %766 = vmatprep.subr.mxu0 0.0
        %767 = vmatpush1.msra.mxu0 0.0
        %768 = vmatprep.subr.mxu0 0.0
        %769 = vmatpush1.msra.mxu0 0.0
        %770 = vmatprep.subr.mxu0 0.0
        %771 = vmatpush1.msra.mxu0 0.0
        %772 = vmatprep.subr.mxu0 0.0
        %773 = vmatpush1.msra.mxu0 0.0
        %774 = vmatprep.subr.mxu0 0.0
        %775 = vmatpush1.msra.mxu0 0.0
        %776 = vmatprep.subr.mxu0 0.0
        %777 = vmatpush1.msra.mxu0 0.0
        %778 = vmatprep.subr.mxu0 0.0
        %779 = vmatpush1.msra.mxu0 0.0
        %780 = vmatprep.subr.mxu0 0.0
        %781 = vmatpush1.msra.mxu0 0.0
        %782 = vmatprep.subr.mxu0 0.0
        %783 = vmatpush1.msra.mxu0 0.0
        %784 = vmatprep.subr.mxu0 0.0
        %785 = vmatpush1.msra.mxu0 0.0
        %786 = vmatprep.subr.mxu0 0.0
        %787 = vmatpush1.msra.mxu0 0.0
        %788 = vmatprep.subr.mxu0 0.0
        %789 = vmatpush1.msra.mxu0 0.0
        %790 = vmatprep.subr.mxu0 0.0
        %791 = vmatpush1.msra.mxu0 0.0
        %792 = vmatprep.subr.mxu0 0.0
        %793 = vmatpush1.msra.mxu0 0.0
        %794 = vmatprep.subr.mxu0 0.0
        %795 = vmatpush1.msra.mxu0 0.0
        %796 = vmatprep.subr.mxu0 0.0
        %797 = vmatpush1.msra.mxu0 0.0
        %798 = vmatprep.subr.mxu0 0.0
        %799 = vmatpush1.msra.mxu0 0.0
        %800 = vmatprep.subr.mxu0 0.0
        %801 = vmatpush1.msra.mxu0 0.0
        %802 = vmatprep.subr.mxu0 0.0
        %803 = vmatpush1.msra.mxu0 0.0
        %804 = vmatprep.subr.mxu0 0.0
        %805 = vmatpush1.msra.mxu0 0.0
        %806 = vmatprep.mubr.f32.mxu0 0.0
        %807 = vmatmul.mubr.f32.gmra.mrb[0].mxu0 %v734
        %v808 = vpop.f32.mrb[0].mxu0
        %v809 = vadd.f32 0.0, %v808
        %v810 = vpop.f32.mrb[0].mxu0
        %v811 = vadd.f32 0.0, %v810
        %812 = vdwg.mxu0
        %v813 = vadd.f32 %v716, %v809
        %v814 = vadd.f32 %v717, %v811
        %815 = vrot.lane.b32.xlu0 %v192, 96
        %v816 = vpop.permute.xlu0 %815
        %817 = vrot.lane.b32.xlu0 %v240, 96
        %v818 = vpop.permute.xlu0 %817
        %819 = vrot.lane.b32.xlu0 %v193, 96
        %v820 = vpop.permute.xlu0 %819
        %vm821 = vcmask 785408
        %v822 = vsel %vm821, %v816, %v818
        %v823 = vsel %vm821, %v818, %v820
        %v826 = vsel %vm237, %v822, 0.0
        %v827 = vsel %vm238, %v823, 0.0
        %s828 = scalar_lea.vmem %s0, 48
        %v829 = vld [vmem:[%s828] sm:$0xff]
        %v831 = vsel %vm245, %v829, 0
        %v834 = vsel %vm249, %v826, 0
        %v837 = vsel %vm249, %v827, 0
        %839 = vmatprep.subr.mxu0 %v837
        %840 = vmatpush1.msra.mxu0 %v834
        %841 = vmatprep.subr.mxu0 0.0
        %842 = vmatpush1.msra.mxu0 0.0
        %843 = vmatprep.subr.mxu0 0.0
        %844 = vmatpush1.msra.mxu0 0.0
        %845 = vmatprep.subr.mxu0 0.0
        %846 = vmatpush1.msra.mxu0 0.0
        %847 = vmatprep.subr.mxu0 0.0
        %848 = vmatpush1.msra.mxu0 0.0
        %849 = vmatprep.subr.mxu0 0.0
        %850 = vmatpush1.msra.mxu0 0.0
        %851 = vmatprep.subr.mxu0 0.0
        %852 = vmatpush1.msra.mxu0 0.0
        %853 = vmatprep.subr.mxu0 0.0
        %854 = vmatpush1.msra.mxu0 0.0
        %855 = vmatprep.subr.mxu0 0.0
        %856 = vmatpush1.msra.mxu0 0.0
        %857 = vmatprep.subr.mxu0 0.0
        %858 = vmatpush1.msra.mxu0 0.0
        %859 = vmatprep.subr.mxu0 0.0
        %860 = vmatpush1.msra.mxu0 0.0
        %861 = vmatprep.subr.mxu0 0.0
        %862 = vmatpush1.msra.mxu0 0.0
        %863 = vmatprep.subr.mxu0 0.0
        %864 = vmatpush1.msra.mxu0 0.0
        %865 = vmatprep.subr.mxu0 0.0
        %866 = vmatpush1.msra.mxu0 0.0
        %867 = vmatprep.subr.mxu0 0.0
        %868 = vmatpush1.msra.mxu0 0.0
        %869 = vmatprep.subr.mxu0 0.0
        %870 = vmatpush1.msra.mxu0 0.0
        %871 = vmatprep.subr.mxu0 0.0
        %872 = vmatpush1.msra.mxu0 0.0
        %873 = vmatprep.subr.mxu0 0.0
        %874 = vmatpush1.msra.mxu0 0.0
        %875 = vmatprep.subr.mxu0 0.0
        %876 = vmatpush1.msra.mxu0 0.0
        %877 = vmatprep.subr.mxu0 0.0
        %878 = vmatpush1.msra.mxu0 0.0
        %879 = vmatprep.subr.mxu0 0.0
        %880 = vmatpush1.msra.mxu0 0.0
        %881 = vmatprep.subr.mxu0 0.0
        %882 = vmatpush1.msra.mxu0 0.0
        %883 = vmatprep.subr.mxu0 0.0
        %884 = vmatpush1.msra.mxu0 0.0
        %885 = vmatprep.subr.mxu0 0.0
        %886 = vmatpush1.msra.mxu0 0.0
        %887 = vmatprep.subr.mxu0 0.0
        %888 = vmatpush1.msra.mxu0 0.0
        %889 = vmatprep.subr.mxu0 0.0
        %890 = vmatpush1.msra.mxu0 0.0
        %891 = vmatprep.subr.mxu0 0.0
        %892 = vmatpush1.msra.mxu0 0.0
        %893 = vmatprep.subr.mxu0 0.0
        %894 = vmatpush1.msra.mxu0 0.0
        %895 = vmatprep.subr.mxu0 0.0
        %896 = vmatpush1.msra.mxu0 0.0
        %897 = vmatprep.subr.mxu0 0.0
        %898 = vmatpush1.msra.mxu0 0.0
        %899 = vmatprep.subr.mxu0 0.0
        %900 = vmatpush1.msra.mxu0 0.0
        %901 = vmatprep.subr.mxu0 0.0
        %902 = vmatpush1.msra.mxu0 0.0
        %903 = vmatprep.mubr.f32.mxu0 0.0
        %904 = vmatmul.mubr.f32.gmra.mrb[0].mxu0 %v831
        %v905 = vpop.f32.mrb[0].mxu0
        %v906 = vadd.f32 0.0, %v905
        %v907 = vpop.f32.mrb[0].mxu0
        %v908 = vadd.f32 0.0, %v907
        %909 = vdwg.mxu0
        %v910 = vadd.f32 %v813, %v906
        %v911 = vadd.f32 %v814, %v908
        %s912 = scalar_lea.vmem %s0, 56
        %v913 = vld [vmem:[%s912] sm:$0xff]
        %914 = vrot.lane.b32.xlu0 %v192, 95
        %v915 = vpop.permute.xlu0 %914
        %916 = vrot.lane.b32.xlu0 %v240, 95
        %v917 = vpop.permute.xlu0 %916
        %918 = vrot.lane.b32.xlu0 %v193, 95
        %v919 = vpop.permute.xlu0 %918
        %vm920 = vcmask 777216
        %v921 = vsel %vm920, %v915, %v917
        %v922 = vsel %vm920, %v917, %v919
        %v924 = vsel %vm245, %v913, 0
        %v926 = vsel %vm249, %v921, 0
        %v928 = vsel %vm249, %v922, 0
        %930 = vmatprep.subr.mxu0 %v928
        %931 = vmatpush1.msra.mxu0 %v926
        %932 = vmatprep.subr.mxu0 0.0
        %933 = vmatpush1.msra.mxu0 0.0
        %934 = vmatprep.subr.mxu0 0.0
        %935 = vmatpush1.msra.mxu0 0.0
        %936 = vmatprep.subr.mxu0 0.0
        %937 = vmatpush1.msra.mxu0 0.0
        %938 = vmatprep.subr.mxu0 0.0
        %939 = vmatpush1.msra.mxu0 0.0
        %940 = vmatprep.subr.mxu0 0.0
        %941 = vmatpush1.msra.mxu0 0.0
        %942 = vmatprep.subr.mxu0 0.0
        %943 = vmatpush1.msra.mxu0 0.0
        %944 = vmatprep.subr.mxu0 0.0
        %945 = vmatpush1.msra.mxu0 0.0
        %946 = vmatprep.subr.mxu0 0.0
        %947 = vmatpush1.msra.mxu0 0.0
        %948 = vmatprep.subr.mxu0 0.0
        %949 = vmatpush1.msra.mxu0 0.0
        %950 = vmatprep.subr.mxu0 0.0
        %951 = vmatpush1.msra.mxu0 0.0
        %952 = vmatprep.subr.mxu0 0.0
        %953 = vmatpush1.msra.mxu0 0.0
        %954 = vmatprep.subr.mxu0 0.0
        %955 = vmatpush1.msra.mxu0 0.0
        %956 = vmatprep.subr.mxu0 0.0
        %957 = vmatpush1.msra.mxu0 0.0
        %958 = vmatprep.subr.mxu0 0.0
        %959 = vmatpush1.msra.mxu0 0.0
        %960 = vmatprep.subr.mxu0 0.0
        %961 = vmatpush1.msra.mxu0 0.0
        %962 = vmatprep.subr.mxu0 0.0
        %963 = vmatpush1.msra.mxu0 0.0
        %964 = vmatprep.subr.mxu0 0.0
        %965 = vmatpush1.msra.mxu0 0.0
        %966 = vmatprep.subr.mxu0 0.0
        %967 = vmatpush1.msra.mxu0 0.0
        %968 = vmatprep.subr.mxu0 0.0
        %969 = vmatpush1.msra.mxu0 0.0
        %970 = vmatprep.subr.mxu0 0.0
        %971 = vmatpush1.msra.mxu0 0.0
        %972 = vmatprep.subr.mxu0 0.0
        %973 = vmatpush1.msra.mxu0 0.0
        %974 = vmatprep.subr.mxu0 0.0
        %975 = vmatpush1.msra.mxu0 0.0
        %976 = vmatprep.subr.mxu0 0.0
        %977 = vmatpush1.msra.mxu0 0.0
        %978 = vmatprep.subr.mxu0 0.0
        %979 = vmatpush1.msra.mxu0 0.0
        %980 = vmatprep.subr.mxu0 0.0
        %981 = vmatpush1.msra.mxu0 0.0
        %982 = vmatprep.subr.mxu0 0.0
        %983 = vmatpush1.msra.mxu0 0.0
        %984 = vmatprep.subr.mxu0 0.0
        %985 = vmatpush1.msra.mxu0 0.0
        %986 = vmatprep.subr.mxu0 0.0
        %987 = vmatpush1.msra.mxu0 0.0
        %988 = vmatprep.subr.mxu0 0.0
        %989 = vmatpush1.msra.mxu0 0.0
        %990 = vmatprep.subr.mxu0 0.0
        %991 = vmatpush1.msra.mxu0 0.0
        %992 = vmatprep.subr.mxu0 0.0
        %993 = vmatpush1.msra.mxu0 0.0
        %994 = vmatprep.mubr.f32.mxu0 0.0
        %995 = vmatmul.mubr.f32.gmra.mrb[0].mxu0 %v924
        %v996 = vpop.f32.mrb[0].mxu0
        %v997 = vadd.f32 0.0, %v996
        %v998 = vpop.f32.mrb[0].mxu0
        %v999 = vadd.f32 0.0, %v998
        %1000 = vdwg.mxu0
        %v1001 = vadd.f32 %v910, %v997
        %v1002 = vadd.f32 %v911, %v999
        %1003 = vrot.lane.b32.xlu0 %v192, 94
        %v1004 = vpop.permute.xlu0 %1003
        %1005 = vrot.lane.b32.xlu0 %v240, 94
        %v1006 = vpop.permute.xlu0 %1005
        %1007 = vrot.lane.b32.xlu0 %v193, 94
        %v1008 = vpop.permute.xlu0 %1007
        %vm1009 = vcmask 769024
        %v1010 = vsel %vm1009, %v1004, %v1006
        %v1011 = vsel %vm1009, %v1006, %v1008
        %v1014 = vsel %vm431, %v1010, 0.0
        %v1015 = vsel %vm432, %v1011, 0.0
        %s1016 = scalar_lea.vmem %s0, 64
        %v1017 = vld [vmem:[%s1016] sm:$0xff]
        %v1019 = vsel %vm245, %v1017, 0
        %v1022 = vsel %vm249, %v1014, 0
        %v1025 = vsel %vm249, %v1015, 0
        %1027 = vmatprep.subr.mxu0 %v1025
        %1028 = vmatpush1.msra.mxu0 %v1022
        %1029 = vmatprep.subr.mxu0 0.0
        %1030 = vmatpush1.msra.mxu0 0.0
        %1031 = vmatprep.subr.mxu0 0.0
        %1032 = vmatpush1.msra.mxu0 0.0
        %1033 = vmatprep.subr.mxu0 0.0
        %1034 = vmatpush1.msra.mxu0 0.0
        %1035 = vmatprep.subr.mxu0 0.0
        %1036 = vmatpush1.msra.mxu0 0.0
        %1037 = vmatprep.subr.mxu0 0.0
        %1038 = vmatpush1.msra.mxu0 0.0
        %1039 = vmatprep.subr.mxu0 0.0
        %1040 = vmatpush1.msra.mxu0 0.0
        %1041 = vmatprep.subr.mxu0 0.0
        %1042 = vmatpush1.msra.mxu0 0.0
        %1043 = vmatprep.subr.mxu0 0.0
        %1044 = vmatpush1.msra.mxu0 0.0
        %1045 = vmatprep.subr.mxu0 0.0
        %1046 = vmatpush1.msra.mxu0 0.0
        %1047 = vmatprep.subr.mxu0 0.0
        %1048 = vmatpush1.msra.mxu0 0.0
        %1049 = vmatprep.subr.mxu0 0.0
        %1050 = vmatpush1.msra.mxu0 0.0
        %1051 = vmatprep.subr.mxu0 0.0
        %1052 = vmatpush1.msra.mxu0 0.0
        %1053 = vmatprep.subr.mxu0 0.0
        %1054 = vmatpush1.msra.mxu0 0.0
        %1055 = vmatprep.subr.mxu0 0.0
        %1056 = vmatpush1.msra.mxu0 0.0
        %1057 = vmatprep.subr.mxu0 0.0
        %1058 = vmatpush1.msra.mxu0 0.0
        %1059 = vmatprep.subr.mxu0 0.0
        %1060 = vmatpush1.msra.mxu0 0.0
        %1061 = vmatprep.subr.mxu0 0.0
        %1062 = vmatpush1.msra.mxu0 0.0
        %1063 = vmatprep.subr.mxu0 0.0
        %1064 = vmatpush1.msra.mxu0 0.0
        %1065 = vmatprep.subr.mxu0 0.0
        %1066 = vmatpush1.msra.mxu0 0.0
        %1067 = vmatprep.subr.mxu0 0.0
        %1068 = vmatpush1.msra.mxu0 0.0
        %1069 = vmatprep.subr.mxu0 0.0
        %1070 = vmatpush1.msra.mxu0 0.0
        %1071 = vmatprep.subr.mxu0 0.0
        %1072 = vmatpush1.msra.mxu0 0.0
        %1073 = vmatprep.subr.mxu0 0.0
        %1074 = vmatpush1.msra.mxu0 0.0
        %1075 = vmatprep.subr.mxu0 0.0
        %1076 = vmatpush1.msra.mxu0 0.0
        %1077 = vmatprep.subr.mxu0 0.0
        %1078 = vmatpush1.msra.mxu0 0.0
        %1079 = vmatprep.subr.mxu0 0.0
        %1080 = vmatpush1.msra.mxu0 0.0
        %1081 = vmatprep.subr.mxu0 0.0
        %1082 = vmatpush1.msra.mxu0 0.0
        %1083 = vmatprep.subr.mxu0 0.0
        %1084 = vmatpush1.msra.mxu0 0.0
        %1085 = vmatprep.subr.mxu0 0.0
        %1086 = vmatpush1.msra.mxu0 0.0
        %1087 = vmatprep.subr.mxu0 0.0
        %1088 = vmatpush1.msra.mxu0 0.0
        %1089 = vmatprep.subr.mxu0 0.0
        %1090 = vmatpush1.msra.mxu0 0.0
        %1091 = vmatprep.mubr.f32.mxu0 0.0
        %1092 = vmatmul.mubr.f32.gmra.mrb[0].mxu0 %v1019
        %v1093 = vpop.f32.mrb[0].mxu0
        %v1094 = vadd.f32 0.0, %v1093
        %v1095 = vpop.f32.mrb[0].mxu0
        %v1096 = vadd.f32 0.0, %v1095
        %1097 = vdwg.mxu0
        %v1098 = vadd.f32 %v1001, %v1094
        %v1099 = vadd.f32 %v1002, %v1096
        %v1100 = vld [vmem:[%s2] sm:$0xff]
        %1102 = vset.pattern.permute.xlu0 0
        %1103 = vperm.xlu0 %1102, %v1100
        %v1104 = vpop.permute.xlu0 %1103
        %v1106 = vadd.f32 %v1098, 0.0
        %v1107 = vadd.f32 %v1099, 0.0
        %vm1108 = vcmp.ge.f32.partialorder %v1106, %v1104
        %vm1109 = vcmp.ge.f32.partialorder %v1107, %v1104
        %v1110 = vsel %vm1108, %v1104, 0.0
        %v1111 = vsel %vm1109, %v1104, 0.0
        %v1112 = vsub.f32 %v1106, %v1110
        %v1113 = vsub.f32 %v1107, %v1111
        %v1114 = vadd.f32 %v1110, 0.0
        %v1115 = vadd.f32 %v1111, 0.0
        %1116 = vst [vmem:[%s186] sm:$0xff] %v1114
        %1117 = vst [vmem:[%s186 + $0x8] sm:$0xff] %v1115
        %v1118 = vadd.f32 %v1112, %v1098
        %v1119 = vadd.f32 %v1113, %v1099
        %vm1120 = vcmp.ge.f32.partialorder %v1118, %v1104
        %vm1121 = vcmp.ge.f32.partialorder %v1119, %v1104
        %v1122 = vsel %vm1120, %v1104, 0.0
        %v1123 = vsel %vm1121, %v1104, 0.0
        %v1124 = vsub.f32 %v1118, %v1122
        %v1125 = vsub.f32 %v1119, %v1123
        %v1126 = vadd.f32 %v1114, %v1122
        %v1127 = vadd.f32 %v1115, %v1123
        %s1128 = scalar_lea.vmem %s186, 16 [#allocation2]
        %1129 = vst [vmem:[%s1128] sm:$0xff] %v1126
        %1130 = vst [vmem:[%s1128 + $0x8] sm:$0xff] %v1127
        %v1131 = vadd.f32 %v1124, %v1098
        %v1132 = vadd.f32 %v1125, %v1099
        %vm1133 = vcmp.ge.f32.partialorder %v1131, %v1104
        %vm1134 = vcmp.ge.f32.partialorder %v1132, %v1104
        %v1135 = vsel %vm1133, %v1104, 0.0
        %v1136 = vsel %vm1134, %v1104, 0.0
        %v1137 = vsub.f32 %v1131, %v1135
        %v1138 = vsub.f32 %v1132, %v1136
        %v1139 = vadd.f32 %v1126, %v1135
        %v1140 = vadd.f32 %v1127, %v1136
        %s1141 = scalar_lea.vmem %s186, 32 [#allocation2]
        %1142 = vst [vmem:[%s1141] sm:$0xff] %v1139
        %1143 = vst [vmem:[%s1141 + $0x8] sm:$0xff] %v1140
        %v1144 = vadd.f32 %v1137, %v1098
        %v1145 = vadd.f32 %v1138, %v1099
        %vm1146 = vcmp.ge.f32.partialorder %v1144, %v1104
        %vm1147 = vcmp.ge.f32.partialorder %v1145, %v1104
        %v1148 = vsel %vm1146, %v1104, 0.0
        %v1149 = vsel %vm1147, %v1104, 0.0
        %v1150 = vsub.f32 %v1144, %v1148
        %v1151 = vsub.f32 %v1145, %v1149
        %v1152 = vadd.f32 %v1139, %v1148
        %v1153 = vadd.f32 %v1140, %v1149
        %s1154 = scalar_lea.vmem %s186, 48 [#allocation2]
        %1155 = vst [vmem:[%s1154] sm:$0xff] %v1152
        %1156 = vst [vmem:[%s1154 + $0x8] sm:$0xff] %v1153
        %v1157 = vadd.f32 %v1150, %v1098
        %v1158 = vadd.f32 %v1151, %v1099
        %vm1159 = vcmp.ge.f32.partialorder %v1157, %v1104
        %vm1160 = vcmp.ge.f32.partialorder %v1158, %v1104
        %v1161 = vsel %vm1159, %v1104, 0.0
        %v1162 = vsel %vm1160, %v1104, 0.0
        %v1163 = vsub.f32 %v1157, %v1161
        %v1164 = vsub.f32 %v1158, %v1162
        %v1165 = vadd.f32 %v1152, %v1161
        %v1166 = vadd.f32 %v1153, %v1162
        %s1167 = scalar_lea.vmem %s186, 64 [#allocation2]
        %1168 = vst [vmem:[%s1167] sm:$0xff] %v1165
        %1169 = vst [vmem:[%s1167 + $0x8] sm:$0xff] %v1166
        %v1170 = vadd.f32 %v1163, %v1098
        %v1171 = vadd.f32 %v1164, %v1099
        %vm1172 = vcmp.ge.f32.partialorder %v1170, %v1104
        %vm1173 = vcmp.ge.f32.partialorder %v1171, %v1104
        %v1174 = vsel %vm1172, %v1104, 0.0
        %v1175 = vsel %vm1173, %v1104, 0.0
        %v1176 = vsub.f32 %v1170, %v1174
        %v1177 = vsub.f32 %v1171, %v1175
        %v1178 = vadd.f32 %v1165, %v1174
        %v1179 = vadd.f32 %v1166, %v1175
        %s1180 = scalar_lea.vmem %s186, 80 [#allocation2]
        %1181 = vst [vmem:[%s1180] sm:$0xff] %v1178
        %1182 = vst [vmem:[%s1180 + $0x8] sm:$0xff] %v1179
        %v1183 = vadd.f32 %v1176, %v1098
        %v1184 = vadd.f32 %v1177, %v1099
        %vm1185 = vcmp.ge.f32.partialorder %v1183, %v1104
        %vm1186 = vcmp.ge.f32.partialorder %v1184, %v1104
        %v1187 = vsel %vm1185, %v1104, 0.0
        %v1188 = vsel %vm1186, %v1104, 0.0
        %v1189 = vsub.f32 %v1183, %v1187
        %v1190 = vsub.f32 %v1184, %v1188
        %v1191 = vadd.f32 %v1178, %v1187
        %v1192 = vadd.f32 %v1179, %v1188
        %s1193 = scalar_lea.vmem %s186, 96 [#allocation2]
        %1194 = vst [vmem:[%s1193] sm:$0xff] %v1191
        %1195 = vst [vmem:[%s1193 + $0x8] sm:$0xff] %v1192
        %v1196 = vadd.f32 %v1189, %v1098
        %v1197 = vadd.f32 %v1190, %v1099
        %vm1198 = vcmp.ge.f32.partialorder %v1196, %v1104
        %vm1199 = vcmp.ge.f32.partialorder %v1197, %v1104
        %v1200 = vsel %vm1198, %v1104, 0.0
        %v1201 = vsel %vm1199, %v1104, 0.0
        %v1202 = vadd.f32 %v1191, %v1200
        %v1203 = vadd.f32 %v1192, %v1201
        %s1204 = scalar_lea.vmem %s186, 112 [#allocation2]
        %1205 = vst [vmem:[%s1204] sm:$0xff] %v1202
        %1206 = vst [vmem:[%s1204 + $0x8] sm:$0xff] %v1203
        %s1207 = sand.u32 %s112, 1
        %s1208 = sand.u32 %s112, 1
        %s1209 = smul.addr %s1208, 128
        %s1210 = scalar_lea.vmem [#allocation2], %s1209
        // Predicated region
        $region37: #{run_spike_model.1} parent=35 // pred_check
          %p1211 = pneg %p122
        $region38: #{run_spike_model.1} parent=35 // pred_check_branch
          %1213 = sbr.rel (%p1211) target = $region40
        $region39: #{run_spike_model.1} parent=35 // pred_region
          %s1214 = smul.addr %s15, 2
          %s1215 = smul.addr %s1214, 8
          %s1216 = scalar_lea.vmem %s4, %s1215
          // Predicated region
          $region41: #{run_spike_model.1} parent=39 // pred_check
            _
          $region42: #{run_spike_model.1} parent=39 // pred_check_branch
            %1218 = sbr.rel (0) target = $region44
          $region43: #{run_spike_model.1} parent=39 // pred_region
            // Predicated region
            $region45: #{run_spike_model.1} parent=43 // pred_check
              _
            $region46: #{run_spike_model.1} parent=43 // pred_check_branch
              %1220 = sbr.rel (0) target = $region48
            $region47: #{run_spike_model.1} parent=43 // pred_region
              loop: start=0, step=1, limit=1
              $region49: #{run_spike_model.1} parent=47 // loop_pre_header
                _
              $region50: #{run_spike_model.1} parent=47 // loop_header
                %s1222 = sphi 0, %s1226
                %p1223 = scmp.ge.s32.totalorder %s1222, 1
                %s1227 = sphi %s1210, %s1210
                %s1228 = sphi %s1216, %s1216
              $region51: #{run_spike_model.1} parent=47 // loop_header_branch
                %1225 = sbr.rel (%p1223) target = $region55
              $region52: #{run_spike_model.1} parent=47 // loop_body
                %v1229 = vld [vmem:[%s1227] sm:$0xff]
                %1230 = vst [vmem:[%s1228] sm:$0xff] %v1229
                %v1231 = vld [vmem:[%s1227 + $0x8] sm:$0xff]
                %1232 = vst [vmem:[%s1228 + $0x8] sm:$0xff] %v1231
                %v1233 = vld [vmem:[%s1227 + $0x10] sm:$0xff]
                %1234 = vst [vmem:[%s1228 + $0x20] sm:$0xff] %v1233
                %v1235 = vld [vmem:[%s1227 + $0x18] sm:$0xff]
                %1236 = vst [vmem:[%s1228 + $0x28] sm:$0xff] %v1235
                %v1237 = vld [vmem:[%s1227 + $0x20] sm:$0xff]
                %1238 = vst [vmem:[%s1228 + $0x40] sm:$0xff] %v1237
                %v1239 = vld [vmem:[%s1227 + $0x28] sm:$0xff]
                %1240 = vst [vmem:[%s1228 + $0x48] sm:$0xff] %v1239
                %v1241 = vld [vmem:[%s1227 + $0x30] sm:$0xff]
                %1242 = vst [vmem:[%s1228 + $0x60] sm:$0xff] %v1241
                %v1243 = vld [vmem:[%s1227 + $0x38] sm:$0xff]
                %1244 = vst [vmem:[%s1228 + $0x68] sm:$0xff] %v1243
                %v1245 = vld [vmem:[%s1227 + $0x40] sm:$0xff]
                %1246 = vst [vmem:[%s1228 + $0x80] sm:$0xff] %v1245
                %v1247 = vld [vmem:[%s1227 + $0x48] sm:$0xff]
                %1248 = vst [vmem:[%s1228 + $0x88] sm:$0xff] %v1247
                %v1249 = vld [vmem:[%s1227 + $0x50] sm:$0xff]
                %1250 = vst [vmem:[%s1228 + $0xa0] sm:$0xff] %v1249
                %v1251 = vld [vmem:[%s1227 + $0x58] sm:$0xff]
                %1252 = vst [vmem:[%s1228 + $0xa8] sm:$0xff] %v1251
                %v1253 = vld [vmem:[%s1227 + $0x60] sm:$0xff]
                %1254 = vst [vmem:[%s1228 + $0xc0] sm:$0xff] %v1253
                %v1255 = vld [vmem:[%s1227 + $0x68] sm:$0xff]
                %1256 = vst [vmem:[%s1228 + $0xc8] sm:$0xff] %v1255
                %v1257 = vld [vmem:[%s1227 + $0x70] sm:$0xff]
                %1258 = vst [vmem:[%s1228 + $0xe0] sm:$0xff] %v1257
                %v1259 = vld [vmem:[%s1227 + $0x78] sm:$0xff]
                %1260 = vst [vmem:[%s1228 + $0xe8] sm:$0xff] %v1259
              $region53: #{run_spike_model.1} parent=47 // loop_footer
                %s1226 = sadd.s32 1, %s1222
              $region54: #{run_spike_model.1} parent=47 // loop_footer_branch
                %1221 = sbr.rel target = $region50
              $region55: #{run_spike_model.1} parent=47 // loop_exit
                _
            $region48: #{run_spike_model.1} parent=43 // pred_fallthru
              _
            // Predicated region
            $region56: #{run_spike_model.1} parent=43 // pred_check
              _
            $region57: #{run_spike_model.1} parent=43 // pred_check_branch
              %1262 = sbr.rel target = $region59
            $region58: #{run_spike_model.1} parent=43 // pred_region
              _
            $region59: #{run_spike_model.1} parent=43 // pred_fallthru
              _
          $region44: #{run_spike_model.1} parent=39 // pred_fallthru
            _
          %1263 = vnop
        $region40: #{run_spike_model.1} parent=35 // pred_fallthru
          _
      $region36: #{run_spike_model.1} parent=5 // pred_fallthru
        _
      %p1264 = scmp.le.s32.totalorder 2, %s10
      // Predicated region
      $region60: #{run_spike_model.1} parent=5 // pred_check
        %p1265 = pneg %p1264
      $region61: #{run_spike_model.1} parent=5 // pred_check_branch
        %1267 = sbr.rel (%p1265) target = $region63
      $region62: #{run_spike_model.1} parent=5 // pred_region
        %s1268 = ssub.s32 %s10, 2
        // Predicated region
        $region64: #{run_spike_model.1} parent=62 // pred_check
          %p1269 = pneg %p128
        $region65: #{run_spike_model.1} parent=62 // pred_check_branch
          %1271 = sbr.rel (%p1269) target = $region67
        $region66: #{run_spike_model.1} parent=62 // pred_region
          %s1272 = sand.u32 %s113, 1
          %s1273 = sand.u32 %s113, 1
          %s1274 = smul.addr %s1273, 128
          %s1275 = scalar_lea.vmem [#allocation2], %s1274
        $region67: #{run_spike_model.1} parent=62 // pred_fallthru
          _
      $region63: #{run_spike_model.1} parent=5 // pred_fallthru
        _
    $region6: #{run_spike_model.1} parent=1 // loop_footer
      %s14 = sadd.s32 1, %s10
    $region7: #{run_spike_model.1} parent=1 // loop_footer_branch
      %9 = sbr.rel target = $region3
    $region8: #{run_spike_model.1} parent=1 // loop_exit
      _

</llo_original>
